<compile_context>
chip_gen: v7x
topology: tpu7x:2x2x1
jax: 0.10.0
libtpu: 0.0.40
codegen_flags: <defaults>
</compile_context>

<pallas_src>
import functools

import numpy as np
import jax
import jax.numpy as jnp
from jax.experimental import pallas as pl
from jax.experimental.pallas import tpu as pltpu

_KERNEL_SIZE = 11
_SIGMA = 1.5
_K1 = 0.01
_K2 = 0.03


def _vmem_limit_bytes():
    """Generation-aware scoped-VMEM budget (<= 3/4 of physical, capped at 96 MiB)."""
    try:
        cap = int(getattr(pltpu.get_tpu_info(), "vmem_capacity_bytes",
                          64 * 1024 * 1024))
    except Exception:
        cap = 64 * 1024 * 1024  # safe on every generation (v7x has 64 MiB)
    return int(min(cap * 3 // 4, 96 * 1024 * 1024))


def _gaussian_1d(kernel_size=_KERNEL_SIZE, sigma=_SIGMA):
    coords = np.arange(kernel_size, dtype=np.float64) - (kernel_size - 1) / 2.0
    g = np.exp(-(coords ** 2) / (2.0 * sigma ** 2))
    return (g / g.sum()).astype(np.float32)


def _band_matrix_rows(H):
    """A:(Hv, H) so that A @ img is the VALID gaussian blur along rows."""
    g = _gaussian_1d()
    Hv = H - _KERNEL_SIZE + 1
    A = np.zeros((Hv, H), np.float32)
    for i in range(Hv):
        A[i, i:i + _KERNEL_SIZE] = g
    return A


def _band_matrix_cols(W):
    """B:(W, Wv) so that img @ B is the VALID gaussian blur along columns."""
    g = _gaussian_1d()
    Wv = W - _KERNEL_SIZE + 1
    B = np.zeros((W, Wv), np.float32)
    for j in range(Wv):
        B[j:j + _KERNEL_SIZE, j] = g
    return B


def _pick_channel_group(C, H, W, itemsize, vmem_limit):
    """Largest channel-group (divisor of C) whose working set fits the budget.

    Block last-two dims must be (8,128)-friendly or full-extent, so we require
    (cg*H) % 8 == 0 unless cg == C (full extent along the collapsed C*H axis).
    """
    budget = max(int(vmem_limit * 0.6) - 6 * 1024 * 1024, 4 * 1024 * 1024)
    per_cg = (80 + 4 * itemsize) * H * W  # rough per-(channel,pixel) bytes in flight
    valid = [cg for cg in range(1, C + 1)
             if C % cg == 0 and ((cg * H) % 8 == 0 or cg == C)]
    fitting = [cg for cg in valid if per_cg * cg <= budget]
    if fitting:
        return max(fitting)
    # Nothing fits the heuristic budget: best-effort smallest legal group.
    # TODO(synk): add W-halo spatial tiling / block-banded blur matrices for
    # very large planes so the working set stays inside v7x's 64 MiB VMEM.
    return min(valid)


def _ssim_partial_kernel(p_ref, t_ref, a_ref, b_ref, o_ref, *, c1, c2,
                         cg, h, fused_h_blur):
    # p_ref, t_ref: (cg*H, W) slab (cg channels of one batch element).
    # b_ref: (W, Wv) column-direction blur band matrix.
    # a_ref: (Hv, H) row blur, or kron(I_{4*cg}, A) of shape (4*cg*Hv, 4*cg*H).
    # o_ref: (1, 1) partial SSIM-map sum for this grid point (no revisits).
    hv = h - _KERNEL_SIZE + 1

    # Cast AFTER the DMA so HBM traffic stays at the input's native width.
    x = p_ref[...].astype(jnp.float32)
    y = t_ref[...].astype(jnp.float32)

    # Stack the 4 maps needing blurring along the sublane axis so the
    # W-direction blur is a single MXU matmul (M = 4*cg*H, K = W, N = Wv).
    z = jnp.concatenate([x, y, x * x + y * y, x * y], axis=0)          # (4*cg*H, W)
    zb = jnp.dot(z, b_ref[...], preferred_element_type=jnp.float32)   # (4*cg*H, Wv)

    if fused_h_blur:
        # One matmul does all 4*cg H-direction blurs (small-H regime: the
        # zero blocks of kron(I, A) use MACs that were idle anyway and we save
        # 4*cg-1 MXU drain latencies).
        blurred = jnp.dot(a_ref[...], zb, preferred_element_type=jnp.float32)
    else:
        a = a_ref[...]                                                  # (Hv, H)
        blurred = jnp.concatenate(
            [jnp.dot(a, zb[k * h:(k + 1) * h], preferred_element_type=jnp.float32)
             for k in range(4 * cg)], axis=0)                          # (4*cg*Hv, Wv)

    m = cg * hv
    mu_x = blurred[0 * m:1 * m]
    mu_y = blurred[1 * m:2 * m]
    e_ss = blurred[2 * m:3 * m]          # E[x^2] + E[y^2]
    e_xy = blurred[3 * m:4 * m]          # E[x*y]

    mu_x2 = mu_x * mu_x
    mu_y2 = mu_y * mu_y
    mu_xy = mu_x * mu_y
    sigma_sum = e_ss - mu_x2 - mu_y2     # sigma_x^2 + sigma_y^2
    sigma_xy = e_xy - mu_xy

    num = (2.0 * mu_xy + c1) * (2.0 * sigma_xy + c2)
    den = (mu_x2 + mu_y2 + c1) * (sigma_sum + c2)
    # EUP reciprocal keeps the divide off the VALU slots (error << 5e-3 tol).
    ssim_map = num * pl.reciprocal(den, approx=True)

    o_ref[...] = jnp.sum(jnp.sum(ssim_map, axis=1, keepdims=True),
                         axis=0, keepdims=True)


def ssim_loss(predicted, target, data_range=1.0):
    """1 - SSIM(predicted, target). Inputs are NCHW (PyTorch convention)."""
    if predicted.shape != target.shape:
        raise ValueError("predicted and target must have the same shape")
    N, C, H, W = predicted.shape
    if H < _KERNEL_SIZE or W < _KERNEL_SIZE:
        raise ValueError("spatial dims must be >= the 11x11 SSIM window")
    Hv = H - _KERNEL_SIZE + 1
    Wv = W - _KERNEL_SIZE + 1

    vmem_limit = _vmem_limit_bytes()
    itemsize = jnp.dtype(predicted.dtype).itemsize
    cg = _pick_channel_group(C, H, W, itemsize, vmem_limit)
    G = C // cg

    A = _band_matrix_rows(H)
    B = jnp.asarray(_band_matrix_cols(W))

    # Fuse the 4*cg H-direction blurs into one matmul only while the
    # block-diagonal band matrix stays small (small-image regime).
    a_big_bytes = (4 * cg * Hv) * (4 * cg * H) * 4
    fused = a_big_bytes <= 4 * 1024 * 1024
    if fused:
        A_in = jnp.asarray(np.kron(np.eye(4 * cg, dtype=np.float32), A))
    else:
        A_in = jnp.asarray(A)
    # TODO(synk): for very large H/W, replace the dense band matrices with
    # block-banded tiles (K~128/256 with a 10-tap halo) and/or a bf16 mean
    # path so the blur stays HBM-bound instead of f32-MXU-bound.

    c1 = (_K1 * data_range) ** 2
    c2 = (_K2 * data_range) ** 2
    kernel = functools.partial(_ssim_partial_kernel, c1=c1, c2=c2,
                               cg=cg, h=H, fused_h_blur=fused)

    # Free (layout-preserving) reshape so each grid step gets a 2D (cg*H, W)
    # slab directly — no in-kernel reshape, no extra HBM pass.
    p2 = predicted.reshape(N, C * H, W)
    t2 = target.reshape(N, C * H, W)

    partial = pl.pallas_call(
        kernel,
        out_shape=jax.ShapeDtypeStruct((N, G, 1, 1), jnp.float32),
        grid=(N, G),
        in_specs=[
            pl.BlockSpec((None, cg * H, W), lambda n, g: (n, g, 0)),
            pl.BlockSpec((None, cg * H, W), lambda n, g: (n, g, 0)),
            # Constant blur matrices: fetched once, single-buffered.
            pl.BlockSpec(A_in.shape, lambda n, g: (0, 0),
                         pipeline_mode=pl.Buffered(1)),
            pl.BlockSpec(B.shape, lambda n, g: (0, 0),
                         pipeline_mode=pl.Buffered(1)),
        ],
        out_specs=pl.BlockSpec((None, None, 1, 1), lambda n, g: (n, g, 0, 0)),
        compiler_params=pltpu.CompilerParams(
            # Every grid point writes its own output block -> fully parallel
            # (v7x megacore shards the grid; the scalar-precision concern of a
            # single shared accumulator is gone).
            dimension_semantics=("parallel", "parallel"),
            vmem_limit_bytes=vmem_limit,
        ),
    )(p2, t2, A_in, B)

    ssim_mean = jnp.sum(partial) / float(N * C * Hv * Wv)
    return 1.0 - ssim_mean


class SSIMLoss:
    """Mirror of the PyTorch module: forward(pred, target) = 1 - SSIM."""

    def __init__(self, data_range=1.0, channel=1):
        del channel  # unused in the torch module as well
        self.data_range = float(data_range)

    def __call__(self, predicted, target):
        return ssim_loss(predicted, target, data_range=self.data_range)


def _ssim_loss_reference(predicted, target, data_range=1.0):
    """Pure-XLA reference (depthwise VALID conv with the same gaussian window)."""
    g = _gaussian_1d()
    k2d = jnp.asarray(np.outer(g, g), jnp.float32)[None, None]  # (1,1,11,11) OIHW
    n, c, h, w = predicted.shape

    def blur(v):
        vr = v.reshape(n * c, 1, h, w)
        y = jax.lax.conv_general_dilated(
            vr, k2d, window_strides=(1, 1), padding="VALID",
            precision=jax.lax.Precision.HIGHEST)
        return y.reshape(n, c, h - _KERNEL_SIZE + 1, w - _KERNEL_SIZE + 1)

    x = predicted.astype(jnp.float32)
    y = target.astype(jnp.float32)
    mu_x, mu_y = blur(x), blur(y)
    e_xx, e_yy, e_xy = blur(x * x), blur(y * y), blur(x * y)
    c1 = (_K1 * data_range) ** 2
    c2 = (_K2 * data_range) ** 2
    sxx = e_xx - mu_x * mu_x
    syy = e_yy - mu_y * mu_y
    sxy = e_xy - mu_x * mu_y
    ssim = ((2 * mu_x * mu_y + c1) * (2 * sxy + c2)) / (
        (mu_x * mu_x + mu_y * mu_y + c1) * (sxx + syy + c2))
    return 1.0 - jnp.mean(ssim)


if __name__ == "__main__":
    key = jax.random.PRNGKey(0)
    k_pred, k_tgt = jax.random.split(key)
    # NCHW inputs in [0, 1] (consistent with data_range=1.0).
    predicted = jax.random.uniform(k_pred, (2, 3, 32, 32), dtype=jnp.float32)
    target = jax.random.uniform(k_tgt, (2, 3, 32, 32), dtype=jnp.float32)

    loss_module = SSIMLoss(data_range=1.0, channel=3)
    loss = jax.jit(loss_module.__call__)(predicted, target)
    jax.block_until_ready(loss)

    ref = _ssim_loss_reference(predicted, target)
    if (not bool(jnp.isfinite(loss))) or abs(float(loss) - float(ref)) > 5e-3:
        raise AssertionError(
            f"SSIM mismatch: pallas={float(loss):.6f} reference={float(ref):.6f}")
    print("KERNEL_OK")
</pallas_src>

<mosaic_0001>
module attributes {stable_mosaic.version = 11 : i64} {
  func.func @_ssim_partial_kernel(%arg0: i32, %arg1: i32, %arg2: memref<1x96x32xf32, #tpu.memory_space<vmem>>, %arg3: memref<1x96x32xf32, #tpu.memory_space<vmem>>, %arg4: memref<264x384xf32, #tpu.memory_space<vmem>>, %arg5: memref<32x22xf32, #tpu.memory_space<vmem>>, %arg6: memref<1x1x1x1xf32, #tpu.memory_space<vmem>>) attributes {dimension_semantics = [#tpu.dimension_semantics<parallel>, #tpu.dimension_semantics<parallel>], iteration_bounds = array<i64: 2, 1>, scalar_prefetch = 0 : i64, scratch_operands = 0 : i64, tpu.core_type = #tpu.core_type<tc>, window_params = [{transform_indices = @transform_0, window_bounds = array<i64: 1, 96, 32>}, {transform_indices = @transform_1, window_bounds = array<i64: 1, 96, 32>}, {pipeline_mode = #tpu.pipeline_mode<synchronous>, transform_indices = @transform_2, window_bounds = array<i64: 264, 384>}, {pipeline_mode = #tpu.pipeline_mode<synchronous>, transform_indices = @transform_3, window_bounds = array<i64: 32, 22>}, {transform_indices = @transform_4, window_bounds = array<i64: 1, 1, 1, 1>}]} {
    %c0 = arith.constant 0 : index
    %c0_0 = arith.constant 0 : index
    %c0_1 = arith.constant 0 : index
    %0 = vector.load %arg2[%c0, %c0_0, %c0_1] : memref<1x96x32xf32, #tpu.memory_space<vmem>>, vector<1x96x32xf32>
    %1 = vector.shape_cast %0 : vector<1x96x32xf32> to vector<96x32xf32>
    %c0_2 = arith.constant 0 : index
    %c0_3 = arith.constant 0 : index
    %c0_4 = arith.constant 0 : index
    %2 = vector.load %arg3[%c0_2, %c0_3, %c0_4] : memref<1x96x32xf32, #tpu.memory_space<vmem>>, vector<1x96x32xf32>
    %3 = vector.shape_cast %2 : vector<1x96x32xf32> to vector<96x32xf32>
    %4 = arith.mulf %1, %1 : vector<96x32xf32>
    %5 = arith.mulf %3, %3 : vector<96x32xf32>
    %6 = arith.addf %4, %5 : vector<96x32xf32>
    %7 = arith.mulf %1, %3 : vector<96x32xf32>
    %8 = tpu.concatenate %1, %3, %6, %7 in 0 : vector<96x32xf32>, vector<96x32xf32>, vector<96x32xf32>, vector<96x32xf32> -> vector<384x32xf32>
    %c0_5 = arith.constant 0 : index
    %c0_6 = arith.constant 0 : index
    %9 = vector.load %arg5[%c0_5, %c0_6] : memref<32x22xf32, #tpu.memory_space<vmem>>, vector<32x22xf32>
    %cst = arith.constant dense<0.000000e+00> : vector<384x22xf32>
    %10 = tpu.matmul %8, %9, %cst {dimension_numbers = #tpu.dot_dimension_numbers<[1], [0], [0], [1], [0, 0, 1, 1], [], []>} : vector<384x32xf32>, vector<32x22xf32>, vector<384x22xf32> -> vector<384x22xf32>
    %c0_7 = arith.constant 0 : index
    %c0_8 = arith.constant 0 : index
    %11 = vector.load %arg4[%c0_7, %c0_8] : memref<264x384xf32, #tpu.memory_space<vmem>>, vector<264x384xf32>
    %cst_9 = arith.constant dense<0.000000e+00> : vector<264x22xf32>
    %12 = tpu.matmul %11, %10, %cst_9 {dimension_numbers = #tpu.dot_dimension_numbers<[1], [0], [0], [1], [0, 0, 1, 1], [], []>} : vector<264x384xf32>, vector<384x22xf32>, vector<264x22xf32> -> vector<264x22xf32>
    %13 = vector.extract_strided_slice %12 {offsets = [0, 0], sizes = [66, 22], strides = [1, 1]} : vector<264x22xf32> to vector<66x22xf32>
    %14 = vector.extract_strided_slice %12 {offsets = [66, 0], sizes = [66, 22], strides = [1, 1]} : vector<264x22xf32> to vector<66x22xf32>
    %15 = vector.extract_strided_slice %12 {offsets = [132, 0], sizes = [66, 22], strides = [1, 1]} : vector<264x22xf32> to vector<66x22xf32>
    %16 = vector.extract_strided_slice %12 {offsets = [198, 0], sizes = [66, 22], strides = [1, 1]} : vector<264x22xf32> to vector<66x22xf32>
    %17 = arith.mulf %13, %13 : vector<66x22xf32>
    %18 = arith.mulf %14, %14 : vector<66x22xf32>
    %19 = arith.mulf %13, %14 : vector<66x22xf32>
    %20 = arith.subf %15, %17 : vector<66x22xf32>
    %21 = arith.subf %20, %18 : vector<66x22xf32>
    %22 = arith.subf %16, %19 : vector<66x22xf32>
    %cst_10 = arith.constant 2.000000e+00 : f32
    %23 = vector.broadcast %cst_10 : f32 to vector<66x22xf32>
    %24 = arith.mulf %23, %19 : vector<66x22xf32>
    %cst_11 = arith.constant 9.99999974E-5 : f32
    %25 = vector.broadcast %cst_11 : f32 to vector<66x22xf32>
    %26 = arith.addf %24, %25 : vector<66x22xf32>
    %cst_12 = arith.constant 2.000000e+00 : f32
    %27 = vector.broadcast %cst_12 : f32 to vector<66x22xf32>
    %28 = arith.mulf %27, %22 : vector<66x22xf32>
    %cst_13 = arith.constant 8.99999984E-4 : f32
    %29 = vector.broadcast %cst_13 : f32 to vector<66x22xf32>
    %30 = arith.addf %28, %29 : vector<66x22xf32>
    %31 = arith.mulf %26, %30 : vector<66x22xf32>
    %32 = arith.addf %17, %18 : vector<66x22xf32>
    %cst_14 = arith.constant 9.99999974E-5 : f32
    %33 = vector.broadcast %cst_14 : f32 to vector<66x22xf32>
    %34 = arith.addf %32, %33 : vector<66x22xf32>
    %cst_15 = arith.constant 8.99999984E-4 : f32
    %35 = vector.broadcast %cst_15 : f32 to vector<66x22xf32>
    %36 = arith.addf %21, %35 : vector<66x22xf32>
    %37 = arith.mulf %34, %36 : vector<66x22xf32>
    %38 = tpu.reciprocal %37 {approx = true} : vector<66x22xf32> -> vector<66x22xf32>
    %39 = arith.mulf %31, %38 : vector<66x22xf32>
    %cst_16 = arith.constant dense<0.000000e+00> : vector<66xf32>
    %40 = vector.multi_reduction <add>, %39, %cst_16 [1] : vector<66x22xf32> to vector<66xf32>
    %41 = vector.shape_cast %40 : vector<66xf32> to vector<66x1xf32>
    %cst_17 = arith.constant dense<0.000000e+00> : vector<1xf32>
    %42 = vector.multi_reduction <add>, %41, %cst_17 [0] : vector<66x1xf32> to vector<1xf32>
    %43 = vector.shape_cast %42 : vector<1xf32> to vector<1x1xf32>
    %c0_18 = arith.constant 0 : index
    %c0_19 = arith.constant 0 : index
    %c0_20 = arith.constant 0 : index
    %c0_21 = arith.constant 0 : index
    %44 = vector.load %arg6[%c0_18, %c0_19, %c0_20, %c0_21] : memref<1x1x1x1xf32, #tpu.memory_space<vmem>>, vector<1x1x1x1xf32>
    %45 = vector.shape_cast %44 : vector<1x1x1x1xf32> to vector<1x1xf32>
    %46 = vector.shape_cast %43 : vector<1x1xf32> to vector<1x1x1x1xf32>
    tpu.vector_store %arg6[%c0_18, %c0_19, %c0_20, %c0_21], %46 {strides = array<i32>} : memref<1x1x1x1xf32, #tpu.memory_space<vmem>>, vector<1x1x1x1xf32>,
    return
  }
  func.func @transform_0(%arg0: i32, %arg1: i32) -> (i32, i32, i32) {
    %c0_i32 = arith.constant 0 : i32
    %c0_i32_0 = arith.constant 0 : i32
    return %arg0, %arg1, %c0_i32 : i32, i32, i32
  }
  func.func @transform_1(%arg0: i32, %arg1: i32) -> (i32, i32, i32) {
    %c0_i32 = arith.constant 0 : i32
    %c0_i32_0 = arith.constant 0 : i32
    return %arg0, %arg1, %c0_i32 : i32, i32, i32
  }
  func.func @transform_2(%arg0: i32, %arg1: i32) -> (i32, i32) {
    %c0_i32 = arith.constant 0 : i32
    %c0_i32_0 = arith.constant 0 : i32
    %c0_i32_1 = arith.constant 0 : i32
    return %c0_i32, %c0_i32_0 : i32, i32
  }
  func.func @transform_3(%arg0: i32, %arg1: i32) -> (i32, i32) {
    %c0_i32 = arith.constant 0 : i32
    %c0_i32_0 = arith.constant 0 : i32
    %c0_i32_1 = arith.constant 0 : i32
    return %c0_i32, %c0_i32_0 : i32, i32
  }
  func.func @transform_4(%arg0: i32, %arg1: i32) -> (i32, i32, i32, i32) {
    %c0_i32 = arith.constant 0 : i32
    %c0_i32_0 = arith.constant 0 : i32
    %c0_i32_1 = arith.constant 0 : i32
    return %arg0, %arg1, %c0_i32, %c0_i32_0 : i32, i32, i32, i32
  }
}

</mosaic_0001>

<llo_original>
// kernel: a_call__.1
$region0: #{a_call__.1}
  #allocation0 [shape = 'u32[]', space=smem, size = 0x4, offset = 0x4, fixed_abs, tag = 'smem constant byte address 0x4 - core index']
  #allocation1 [shape = 'u32[144,128]{1,0:T(1,128)}', space=vmem, size = 0x12000, scoped, tag = 'internal scratch']
  %s0 = inlined_call_operand.hbm [shape: f32[2,96,32], index: 0, kind: input, shape index: {}]
  %s1 = inlined_call_operand.hbm [shape: f32[2,96,32], index: 1, kind: input, shape index: {}]
  %s2 = inlined_call_operand.hbm [shape: f32[264,384], index: 2, kind: input, shape index: {}]
  %s3 = inlined_call_operand.hbm [shape: f32[32,22], index: 3, kind: input, shape index: {}]
  %s4 = inlined_call_operand.vmem [shape: f32[2,1,1,1], index: 4, kind: output, shape index: {}]
  %s5 = sld [smem:[#allocation0]]
  $region65: #{a_call__.1} parent=0
    _
  %s7 = ssub.s32 1, %s5
  %s8 = scalar_select 0, %s7, %s5
  $region1: #{a_call__.1} parent=0
    #allocation2 [shape = 'u8[98304]{0}', space=vmem, size = 0x18000, scoped, tag = 'input window, operand 0']
    #allocation3 [shape = 's32[2]{0}', space=sflag, size = 0x8, scoped, tag = 'scoped memory for a_call__.1']
    #allocation4 [shape = 'u8[98304]{0}', space=vmem, size = 0x18000, scoped, tag = 'input window, operand 1']
    #allocation5 [shape = 's32[2]{0}', space=sflag, size = 0x8, scoped, tag = 'scoped memory for a_call__.1']
    #allocation6 [shape = 'u8[405504]{0}', space=vmem, size = 0x63000, scoped, tag = 'input window, operand 2, single buffered']
    #allocation7 [shape = 'u8[16384]{0}', space=vmem, size = 0x4000, scoped, tag = 'input window, operand 3, single buffered']
    #allocation8 [shape = 's32[1]{0}', space=sflag, size = 0x4, scoped, tag = 'scoped memory for a_call__.1']
    %9 = vsyncpa [#allocation3], 0
    %s10 = scalar_lea.sflag [#allocation3], 1
    %11 = vsyncpa %s10, 0
    %12 = vsyncpa [#allocation5], 0
    %s13 = scalar_lea.sflag [#allocation5], 1
    %14 = vsyncpa %s13, 0
    %15 = vsyncpa [#allocation8], 0
    loop: start=0, step=1, limit=4
    $region2: #{a_call__.1} parent=1 // loop_pre_header
      _
    $region3: #{a_call__.1} parent=1 // loop_header
      %s17 = sphi 0, %s21
      %p18 = scmp.ge.s32.totalorder %s17, 4
      %s24 = sphi 0, %s36
      %s25 = sphi 0, %s32
      %s26 = sphi 0, %s24
      %s27 = sphi 0, %s25
      %s28 = sphi 0, %s26
      %s29 = sphi 0, %s27
      %s41 = sphi 0, %s43
      %s44 = sphi 0, %s41
      %s45 = sphi 0, %s44
      %s61 = sphi 0, %s45
      %s69 = sphi 0, %s71
      %s72 = sphi 0, %s69
      %s73 = sphi 0, %s72
      %s89 = sphi 0, %s73
      %s93 = sphi 0, %s93
      %s95 = sphi 0, %s93
      %s96 = sphi 0, %s95
      %s110 = sphi 0, %s96
      %s114 = sphi 0, %s114
      %s116 = sphi 0, %s114
      %s117 = sphi 0, %s116
      %s131 = sphi 0, %s117
      %s139 = sphi 0, %s141
      %s142 = sphi 0, %s139
      %s143 = sphi 0, %s142
      %s159 = sphi 0, %s143
    $region4: #{a_call__.1} parent=1 // loop_header_branch
      %20 = sbr.rel (%p18) target = $region8
    $region5: #{a_call__.1} parent=1 // loop_body
      %s22 = ssub.s32 %s17, 1
      %s23 = ssub.s32 %s17, 2
      %s30 = sadd.s32 1, %s25
      %p31 = scmp.ge.s32.totalorder %s30, 1
      %s32 = scalar_select %p31, 0, %s30
      %s33 = sadd.s32 1, %s24
      %s34 = scalar_select %p31, %s33, %s24
      %p35 = scmp.ge.s32.totalorder %s34, 2
      %s36 = scalar_select %p35, 0, %s34
      %s37 = ssub.s32 %s24, %s36
      %s38 = ssub.s32 %s25, %s32
      %s39 = sor.u32 %s37, %s38
      %p40 = scmp.eq.s32.totalorder %s39, 0
      %s42 = sadd.s32 %s41, 1
      %s43 = scalar_select %p40, %s41, %s42
      %p46 = pneg %p40
      %p47 = scmp.eq.s32.totalorder %s17, 1
      %p48 = por %p46, %p47
      %p49 = scmp.ne.s32.totalorder %s41, %s44
      %p50 = scmp.eq.s32.totalorder %s17, 0
      %p51 = por %p49, %p50
      %p52 = scmp.ne.s32.totalorder %s41, %s44
      %p53 = scmp.eq.s32.totalorder %s22, 1
      %p54 = por %p52, %p53
      %p55 = scmp.ne.s32.totalorder %s44, %s45
      %p56 = scmp.eq.s32.totalorder %s22, 0
      %p57 = por %p55, %p56
      %p58 = scmp.ne.s32.totalorder %s44, %s45
      %p59 = scmp.eq.s32.totalorder %s23, 1
      %p60 = por %p58, %p59
      %p62 = scmp.ne.s32.totalorder %s45, %s61
      %p63 = scmp.eq.s32.totalorder %s23, 0
      %p64 = por %p62, %p63
      %s65 = ssub.s32 %s24, %s36
      %s66 = ssub.s32 %s25, %s32
      %s67 = sor.u32 %s65, %s66
      %p68 = scmp.eq.s32.totalorder %s67, 0
      %s70 = sadd.s32 %s69, 1
      %s71 = scalar_select %p68, %s69, %s70
      %p74 = pneg %p68
      %p75 = scmp.eq.s32.totalorder %s17, 1
      %p76 = por %p74, %p75
      %p77 = scmp.ne.s32.totalorder %s69, %s72
      %p78 = scmp.eq.s32.totalorder %s17, 0
      %p79 = por %p77, %p78
      %p80 = scmp.ne.s32.totalorder %s69, %s72
      %p81 = scmp.eq.s32.totalorder %s22, 1
      %p82 = por %p80, %p81
      %p83 = scmp.ne.s32.totalorder %s72, %s73
      %p84 = scmp.eq.s32.totalorder %s22, 0
      %p85 = por %p83, %p84
      %p86 = scmp.ne.s32.totalorder %s72, %s73
      %p87 = scmp.eq.s32.totalorder %s23, 1
      %p88 = por %p86, %p87
      %p90 = scmp.ne.s32.totalorder %s73, %s89
      %p91 = scmp.eq.s32.totalorder %s23, 0
      %p92 = por %p90, %p91
      %s94 = sadd.s32 %s93, 1
      %p97 = scmp.eq.s32.totalorder %s17, 1
      %p98 = scmp.ne.s32.totalorder %s93, %s95
      %p99 = scmp.eq.s32.totalorder %s17, 0
      %p100 = por %p98, %p99
      %p101 = scmp.ne.s32.totalorder %s93, %s95
      %p102 = scmp.eq.s32.totalorder %s22, 1
      %p103 = por %p101, %p102
      %p104 = scmp.ne.s32.totalorder %s95, %s96
      %p105 = scmp.eq.s32.totalorder %s22, 0
      %p106 = por %p104, %p105
      %p107 = scmp.ne.s32.totalorder %s95, %s96
      %p108 = scmp.eq.s32.totalorder %s23, 1
      %p109 = por %p107, %p108
      %p111 = scmp.ne.s32.totalorder %s96, %s110
      %p112 = scmp.eq.s32.totalorder %s23, 0
      %p113 = por %p111, %p112
      %s115 = sadd.s32 %s114, 1
      %p118 = scmp.eq.s32.totalorder %s17, 1
      %p119 = scmp.ne.s32.totalorder %s114, %s116
      %p120 = scmp.eq.s32.totalorder %s17, 0
      %p121 = por %p119, %p120
      %p122 = scmp.ne.s32.totalorder %s114, %s116
      %p123 = scmp.eq.s32.totalorder %s22, 1
      %p124 = por %p122, %p123
      %p125 = scmp.ne.s32.totalorder %s116, %s117
      %p126 = scmp.eq.s32.totalorder %s22, 0
      %p127 = por %p125, %p126
      %p128 = scmp.ne.s32.totalorder %s116, %s117
      %p129 = scmp.eq.s32.totalorder %s23, 1
      %p130 = por %p128, %p129
      %p132 = scmp.ne.s32.totalorder %s117, %s131
      %p133 = scmp.eq.s32.totalorder %s23, 0
      %p134 = por %p132, %p133
      %s135 = ssub.s32 %s24, %s36
      %s136 = ssub.s32 %s25, %s32
      %s137 = sor.u32 %s135, %s136
      %p138 = scmp.eq.s32.totalorder %s137, 0
      %s140 = sadd.s32 %s139, 1
      %s141 = scalar_select %p138, %s139, %s140
      %p144 = pneg %p138
      %p145 = scmp.eq.s32.totalorder %s17, 1
      %p146 = por %p144, %p145
      %p147 = scmp.ne.s32.totalorder %s139, %s142
      %p148 = scmp.eq.s32.totalorder %s17, 0
      %p149 = por %p147, %p148
      %p150 = scmp.ne.s32.totalorder %s139, %s142
      %p151 = scmp.eq.s32.totalorder %s22, 1
      %p152 = por %p150, %p151
      %p153 = scmp.ne.s32.totalorder %s142, %s143
      %p154 = scmp.eq.s32.totalorder %s22, 0
      %p155 = por %p153, %p154
      %p156 = scmp.ne.s32.totalorder %s142, %s143
      %p157 = scmp.eq.s32.totalorder %s23, 1
      %p158 = por %p156, %p157
      %p160 = scmp.ne.s32.totalorder %s143, %s159
      %p161 = scmp.eq.s32.totalorder %s23, 0
      %p162 = por %p160, %p161
      %p163 = scmp.le.s32.totalorder 1, %s17
      %p164 = scmp.lt.s32.totalorder %s17, 3
      %p165 = pnand %p163, %p164
      %p166 = pneg %p165
      // Predicated region
      $region9: #{a_call__.1} parent=5 // pred_check
        _
      $region10: #{a_call__.1} parent=5 // pred_check_branch
        %168 = sbr.rel (%p165) target = $region12
      $region11: #{a_call__.1} parent=5 // pred_region
        %s169 = ssub.s32 %s17, 1
        // Predicated region
        $region13: #{a_call__.1} parent=11 // pred_check
          %p170 = pneg %p106
        $region14: #{a_call__.1} parent=11 // pred_check_branch
          %172 = sbr.rel (%p170) target = $region16
        $region15: #{a_call__.1} parent=11 // pred_region
          %s174 = ssub.s32 12672, 12672
          %175 = vsyncadd [#allocation5], %s174
          %s176 = sshll.u32 [#allocation6], 4
          %s177 = int_to_ptr.vmem [resolvable:$true] %s176
          %182 = dma.hbm_to_vmem [thread:$0]  %s2, 12672, %s177, [#allocation5], 384, 384, 24
        $region16: #{a_call__.1} parent=11 // pred_fallthru
          _
        // Predicated region
        $region17: #{a_call__.1} parent=11 // pred_check
          %p183 = pneg %p127
        $region18: #{a_call__.1} parent=11 // pred_check_branch
          %185 = sbr.rel (%p183) target = $region20
        $region19: #{a_call__.1} parent=11 // pred_region
          %s187 = ssub.s32 512, 512
          %188 = vsyncadd [#allocation8], %s187
          %s189 = sshll.u32 [#allocation7], 4
          %s190 = int_to_ptr.vmem [resolvable:$true] %s189
          %195 = dma.hbm_to_vmem [thread:$0]  %s3, 512, %s190, [#allocation8], 128, 128, 8
        $region20: #{a_call__.1} parent=11 // pred_fallthru
          _
      $region12: #{a_call__.1} parent=5 // pred_fallthru
        _
      %p196 = scmp.lt.s32.totalorder %s17, 2
      // Predicated region
      $region21: #{a_call__.1} parent=5 // pred_check
        %p197 = pneg %p196
      $region22: #{a_call__.1} parent=5 // pred_check_branch
        %199 = sbr.rel (%p197) target = $region24
      $region23: #{a_call__.1} parent=5 // pred_region
        // Predicated region
        $region25: #{a_call__.1} parent=23 // pred_check
          %p200 = pneg %p51
        $region26: #{a_call__.1} parent=23 // pred_check_branch
          %202 = sbr.rel (%p200) target = $region28
        $region27: #{a_call__.1} parent=23 // pred_region
          %s203 = sand.u32 %s41, 1
          %s204 = scalar_lea.sflag [#allocation3], %s203
          %s205 = sand.u32 %s41, 1
          %s206 = smul.addr %s205, 96
          %s207 = scalar_lea.vmem [#allocation2], %s206
          %s208 = smul.u32 12, %s25
          %s210 = ssub.s32 1536, 1536
          %211 = vsyncadd %s204, %s210
          %s212 = smul.addr %s24, 12
          %s213 = sadd.s32 %s208, %s212
          %s214 = smul.addr %s213, 128
          %s215 = scalar_lea.hbm %s0, %s214
          %s216 = sshll.u32 %s207, 4
          %s217 = int_to_ptr.vmem [resolvable:$true] %s216
          %222 = dma.hbm_to_vmem [thread:$0]  %s215, 1536, %s217, %s204, 128, 128, 8
        $region28: #{a_call__.1} parent=23 // pred_fallthru
          _
        // Predicated region
        $region29: #{a_call__.1} parent=23 // pred_check
          %p223 = pneg %p79
        $region30: #{a_call__.1} parent=23 // pred_check_branch
          %225 = sbr.rel (%p223) target = $region32
        $region31: #{a_call__.1} parent=23 // pred_region
          %s226 = sand.u32 %s17, 1
          %s227 = scalar_lea.sflag [#allocation5], %s226
          %s228 = sand.u32 %s69, 1
          %s229 = smul.addr %s228, 96
          %s230 = scalar_lea.vmem [#allocation4], %s229
          %s231 = smul.u32 12, %s25
          %s233 = ssub.s32 1536, 1536
          %234 = vsyncadd %s227, %s233
          %s235 = smul.addr %s24, 12
          %s236 = sadd.s32 %s231, %s235
          %s237 = smul.addr %s236, 128
          %s238 = scalar_lea.hbm %s1, %s237
          %s239 = sshll.u32 %s230, 4
          %s240 = int_to_ptr.vmem [resolvable:$true] %s239
          %245 = dma.hbm_to_vmem [thread:$0]  %s238, 1536, %s240, %s227, 128, 128, 8
        $region32: #{a_call__.1} parent=23 // pred_fallthru
          _
      $region24: #{a_call__.1} parent=5 // pred_fallthru
        _
      %p246 = scmp.le.s32.totalorder 1, %s17
      %p247 = scmp.lt.s32.totalorder %s17, 3
      %p248 = pnand %p246, %p247
      %p249 = pneg %p248
      // Predicated region
      $region33: #{a_call__.1} parent=5 // pred_check
        _
      $region34: #{a_call__.1} parent=5 // pred_check_branch
        %251 = sbr.rel (%p248) target = $region36
      $region35: #{a_call__.1} parent=5 // pred_region
        %s252 = ssub.s32 %s17, 1
        %s253 = sand.u32 %s44, 1
        %s254 = scalar_lea.sflag [#allocation3], %s253
        %s255 = sand.u32 %s44, 1
        %s256 = smul.addr %s255, 96
        %s257 = scalar_lea.vmem [#allocation2], %s256
        // Predicated region
        $region37: #{a_call__.1} parent=35 // pred_check
          %p258 = pneg %p57
        $region38: #{a_call__.1} parent=35 // pred_check_branch
          %260 = sbr.rel (%p258) target = $region40
        $region39: #{a_call__.1} parent=35 // pred_region
          %261 = dma.done %s254, 1536
        $region40: #{a_call__.1} parent=35 // pred_fallthru
          _
        %s262 = sand.u32 %s22, 1
        %s263 = scalar_lea.sflag [#allocation5], %s262
        %s264 = sand.u32 %s72, 1
        %s265 = smul.addr %s264, 96
        %s266 = scalar_lea.vmem [#allocation4], %s265
        // Predicated region
        $region41: #{a_call__.1} parent=35 // pred_check
          %p267 = pneg %p85
        $region42: #{a_call__.1} parent=35 // pred_check_branch
          %269 = sbr.rel (%p267) target = $region44
        $region43: #{a_call__.1} parent=35 // pred_region
          %270 = dma.done %s263, 1536
        $region44: #{a_call__.1} parent=35 // pred_fallthru
          _
        // Predicated region
        $region45: #{a_call__.1} parent=35 // pred_check
          %p271 = pneg %p106
        $region46: #{a_call__.1} parent=35 // pred_check_branch
          %273 = sbr.rel (%p271) target = $region48
        $region47: #{a_call__.1} parent=35 // pred_region
          %274 = dma.done [#allocation5], 12672
        $region48: #{a_call__.1} parent=35 // pred_fallthru
          _
        // Predicated region
        $region49: #{a_call__.1} parent=35 // pred_check
          %p275 = pneg %p127
        $region50: #{a_call__.1} parent=35 // pred_check_branch
          %277 = sbr.rel (%p275) target = $region52
        $region51: #{a_call__.1} parent=35 // pred_region
          %278 = dma.done [#allocation8], 512
        $region52: #{a_call__.1} parent=35 // pred_fallthru
          _
        %s279 = sand.u32 %s44, 1
        %s280 = scalar_lea.sflag [#allocation3], %s279
        %s281 = sand.u32 %s44, 1
        %s282 = smul.addr %s281, 96
        %s283 = scalar_lea.vmem [#allocation2], %s282
        %p284 = pneg %p57
        %p285 = pneg %p54
        %s286 = sand.u32 %s22, 1
        %s287 = scalar_lea.sflag [#allocation5], %s286
        %s288 = sand.u32 %s72, 1
        %s289 = smul.addr %s288, 96
        %s290 = scalar_lea.vmem [#allocation4], %s289
        %p291 = pneg %p85
        %p292 = pneg %p82
        %p293 = pneg %p106
        %p294 = pneg %p103
        %p295 = pneg %p127
        %p296 = pneg %p124
        %p297 = pneg %p155
        %p298 = pneg %p152
        %p299 = scmp.lt.s32.totalorder %s26, 1
        %s300 = scalar_select %p299, %s26, 1
        %p301 = scmp.lt.s32.totalorder %s27, 0
        %s302 = scalar_select %p301, %s27, 0
        %s303 = sadd.s32 %s302, %s300
        %s304 = scalar_lea.vmem %s4, %s303
        %s305 = smul.u32 12, %s27
        %s306 = smul.u32 12, %s27
        %p307 = scmp.lt.s32.totalorder %s26, 1
        %s308 = scalar_select %p307, %s26, 1
        %p309 = scmp.lt.s32.totalorder %s27, 0
        %s310 = scalar_select %p309, %s27, 0
        %s311 = sadd.s32 %s310, %s308
        %s312 = scalar_lea.vmem %s4, %s311
        %v313 = vld [vmem:[%s257] sm:$0xff]
        %v314 = vld [vmem:[%s257 + $0x8] sm:$0xff]
        %v315 = vld [vmem:[%s257 + $0x10] sm:$0xff]
        %v316 = vld [vmem:[%s257 + $0x18] sm:$0xff]
        %v317 = vld [vmem:[%s257 + $0x20] sm:$0xff]
        %v318 = vld [vmem:[%s257 + $0x28] sm:$0xff]
        %v319 = vld [vmem:[%s257 + $0x30] sm:$0xff]
        %v320 = vld [vmem:[%s257 + $0x38] sm:$0xff]
        %v321 = vld [vmem:[%s257 + $0x40] sm:$0xff]
        %v322 = vld [vmem:[%s257 + $0x48] sm:$0xff]
        %v323 = vld [vmem:[%s257 + $0x50] sm:$0xff]
        %v324 = vld [vmem:[%s257 + $0x58] sm:$0xff]
        %v325 = vld [vmem:[%s266] sm:$0xff]
        %v326 = vld [vmem:[%s266 + $0x8] sm:$0xff]
        %v327 = vld [vmem:[%s266 + $0x10] sm:$0xff]
        %v328 = vld [vmem:[%s266 + $0x18] sm:$0xff]
        %v329 = vld [vmem:[%s266 + $0x20] sm:$0xff]
        %v330 = vld [vmem:[%s266 + $0x28] sm:$0xff]
        %v331 = vld [vmem:[%s266 + $0x30] sm:$0xff]
        %v332 = vld [vmem:[%s266 + $0x38] sm:$0xff]
        %v333 = vld [vmem:[%s266 + $0x40] sm:$0xff]
        %v334 = vld [vmem:[%s266 + $0x48] sm:$0xff]
        %v335 = vld [vmem:[%s266 + $0x50] sm:$0xff]
        %v336 = vld [vmem:[%s266 + $0x58] sm:$0xff]
        %v337 = vmul.f32 %v313, %v313
        %v338 = vmul.f32 %v314, %v314
        %v339 = vmul.f32 %v315, %v315
        %v340 = vmul.f32 %v316, %v316
        %v341 = vmul.f32 %v317, %v317
        %v342 = vmul.f32 %v318, %v318
        %v343 = vmul.f32 %v319, %v319
        %v344 = vmul.f32 %v320, %v320
        %v345 = vmul.f32 %v321, %v321
        %v346 = vmul.f32 %v322, %v322
        %v347 = vmul.f32 %v323, %v323
        %v348 = vmul.f32 %v324, %v324
        %v349 = vmul.f32 %v325, %v325
        %v350 = vmul.f32 %v326, %v326
        %v351 = vmul.f32 %v327, %v327
        %v352 = vmul.f32 %v328, %v328
        %v353 = vmul.f32 %v329, %v329
        %v354 = vmul.f32 %v330, %v330
        %v355 = vmul.f32 %v331, %v331
        %v356 = vmul.f32 %v332, %v332
        %v357 = vmul.f32 %v333, %v333
        %v358 = vmul.f32 %v334, %v334
        %v359 = vmul.f32 %v335, %v335
        %v360 = vmul.f32 %v336, %v336
        %v361 = vadd.f32 %v337, %v349
        %v362 = vadd.f32 %v338, %v350
        %v363 = vadd.f32 %v339, %v351
        %v364 = vadd.f32 %v340, %v352
        %v365 = vadd.f32 %v341, %v353
        %v366 = vadd.f32 %v342, %v354
        %v367 = vadd.f32 %v343, %v355
        %v368 = vadd.f32 %v344, %v356
        %v369 = vadd.f32 %v345, %v357
        %v370 = vadd.f32 %v346, %v358
        %v371 = vadd.f32 %v347, %v359
        %v372 = vadd.f32 %v348, %v360
        %v373 = vmul.f32 %v313, %v325
        %v374 = vmul.f32 %v314, %v326
        %v375 = vmul.f32 %v315, %v327
        %v376 = vmul.f32 %v316, %v328
        %v377 = vmul.f32 %v317, %v329
        %v378 = vmul.f32 %v318, %v330
        %v379 = vmul.f32 %v319, %v331
        %v380 = vmul.f32 %v320, %v332
        %v381 = vmul.f32 %v321, %v333
        %v382 = vmul.f32 %v322, %v334
        %v383 = vmul.f32 %v323, %v335
        %v384 = vmul.f32 %v324, %v336
        %v385 = vld [vmem:[#allocation7] sm:$0xff]
        %v386 = vld [vmem:[#allocation7 + $0x8] sm:$0xff]
        %v387 = vld [vmem:[#allocation7 + $0x10] sm:$0xff]
        %v388 = vld [vmem:[#allocation7 + $0x18] sm:$0xff]
        %vm389 = vcmask 261120
        %v391 = vsel %vm389, %v313, 0
        %v394 = vsel %vm389, %v314, 0
        %v397 = vsel %vm389, %v315, 0
        %v400 = vsel %vm389, %v316, 0
        %v403 = vsel %vm389, %v317, 0
        %v406 = vsel %vm389, %v318, 0
        %v409 = vsel %vm389, %v319, 0
        %v412 = vsel %vm389, %v320, 0
        %v415 = vsel %vm389, %v321, 0
        %v418 = vsel %vm389, %v322, 0
        %v421 = vsel %vm389, %v323, 0
        %v424 = vsel %vm389, %v324, 0
        %v427 = vsel %vm389, %v325, 0
        %v430 = vsel %vm389, %v326, 0
        %v433 = vsel %vm389, %v327, 0
        %v436 = vsel %vm389, %v328, 0
        %v439 = vsel %vm389, %v329, 0
        %v442 = vsel %vm389, %v330, 0
        %v445 = vsel %vm389, %v331, 0
        %v448 = vsel %vm389, %v332, 0
        %v451 = vsel %vm389, %v333, 0
        %v454 = vsel %vm389, %v334, 0
        %v457 = vsel %vm389, %v335, 0
        %v460 = vsel %vm389, %v336, 0
        %v463 = vsel %vm389, %v361, 0
        %v466 = vsel %vm389, %v362, 0
        %v469 = vsel %vm389, %v363, 0
        %v472 = vsel %vm389, %v364, 0
        %v475 = vsel %vm389, %v365, 0
        %v478 = vsel %vm389, %v366, 0
        %v481 = vsel %vm389, %v367, 0
        %v484 = vsel %vm389, %v368, 0
        %v487 = vsel %vm389, %v369, 0
        %v490 = vsel %vm389, %v370, 0
        %v493 = vsel %vm389, %v371, 0
        %v496 = vsel %vm389, %v372, 0
        %v499 = vsel %vm389, %v373, 0
        %v502 = vsel %vm389, %v374, 0
        %v505 = vsel %vm389, %v375, 0
        %v508 = vsel %vm389, %v376, 0
        %v511 = vsel %vm389, %v377, 0
        %v514 = vsel %vm389, %v378, 0
        %v517 = vsel %vm389, %v379, 0
        %v520 = vsel %vm389, %v380, 0
        %v523 = vsel %vm389, %v381, 0
        %v526 = vsel %vm389, %v382, 0
        %v529 = vsel %vm389, %v383, 0
        %v532 = vsel %vm389, %v384, 0
        %534 = vmatprep.subr.mxu0 0.0
        %535 = vmatpush1.msra.mxu0 %v385
        %536 = vmatprep.subr.mxu0 0.0
        %537 = vmatpush1.msra.mxu0 %v386
        %538 = vmatprep.subr.mxu0 0.0
        %539 = vmatpush1.msra.mxu0 %v387
        %540 = vmatprep.subr.mxu0 0.0
        %541 = vmatpush1.msra.mxu0 %v388
        %542 = vmatprep.subr.mxu0 0.0
        %543 = vmatpush1.msra.mxu0 0.0
        %544 = vmatprep.subr.mxu0 0.0
        %545 = vmatpush1.msra.mxu0 0.0
        %546 = vmatprep.subr.mxu0 0.0
        %547 = vmatpush1.msra.mxu0 0.0
        %548 = vmatprep.subr.mxu0 0.0
        %549 = vmatpush1.msra.mxu0 0.0
        %550 = vmatprep.subr.mxu0 0.0
        %551 = vmatpush1.msra.mxu0 0.0
        %552 = vmatprep.subr.mxu0 0.0
        %553 = vmatpush1.msra.mxu0 0.0
        %554 = vmatprep.subr.mxu0 0.0
        %555 = vmatpush1.msra.mxu0 0.0
        %556 = vmatprep.subr.mxu0 0.0
        %557 = vmatpush1.msra.mxu0 0.0
        %558 = vmatprep.subr.mxu0 0.0
        %559 = vmatpush1.msra.mxu0 0.0
        %560 = vmatprep.subr.mxu0 0.0
        %561 = vmatpush1.msra.mxu0 0.0
        %562 = vmatprep.subr.mxu0 0.0
        %563 = vmatpush1.msra.mxu0 0.0
        %564 = vmatprep.subr.mxu0 0.0
        %565 = vmatpush1.msra.mxu0 0.0
        %566 = vmatprep.subr.mxu0 0.0
        %567 = vmatpush1.msra.mxu0 0.0
        %568 = vmatprep.subr.mxu0 0.0
        %569 = vmatpush1.msra.mxu0 0.0
        %570 = vmatprep.subr.mxu0 0.0
        %571 = vmatpush1.msra.mxu0 0.0
        %572 = vmatprep.subr.mxu0 0.0
        %573 = vmatpush1.msra.mxu0 0.0
        %574 = vmatprep.subr.mxu0 0.0
        %575 = vmatpush1.msra.mxu0 0.0
        %576 = vmatprep.subr.mxu0 0.0
        %577 = vmatpush1.msra.mxu0 0.0
        %578 = vmatprep.subr.mxu0 0.0
        %579 = vmatpush1.msra.mxu0 0.0
        %580 = vmatprep.subr.mxu0 0.0
        %581 = vmatpush1.msra.mxu0 0.0
        %582 = vmatprep.subr.mxu0 0.0
        %583 = vmatpush1.msra.mxu0 0.0
        %584 = vmatprep.subr.mxu0 0.0
        %585 = vmatpush1.msra.mxu0 0.0
        %586 = vmatprep.subr.mxu0 0.0
        %587 = vmatpush1.msra.mxu0 0.0
        %588 = vmatprep.subr.mxu0 0.0
        %589 = vmatpush1.msra.mxu0 0.0
        %590 = vmatprep.subr.mxu0 0.0
        %591 = vmatpush1.msra.mxu0 0.0
        %592 = vmatprep.subr.mxu0 0.0
        %593 = vmatpush1.msra.mxu0 0.0
        %594 = vmatprep.subr.mxu0 0.0
        %595 = vmatpush1.msra.mxu0 0.0
        %596 = vmatprep.subr.mxu0 0.0
        %597 = vmatpush1.msra.mxu0 0.0
        %598 = vmatprep.mubr.f32.mxu0 0.0
        %599 = vmatmul.mubr.f32.gmra.mrb[0].mxu0 %v391
        %v600 = vpop.f32.mrb[0].mxu0
        %v601 = vadd.f32 0.0, %v600
        %v602 = vpop.f32.mrb[0].mxu0
        %603 = vmatprep.mubr.f32.mxu0 0.0
        %604 = vmatmul.mubr.f32.gmra.mrb[0].mxu0 %v394
        %v605 = vpop.f32.mrb[0].mxu0
        %v606 = vadd.f32 0.0, %v605
        %v607 = vpop.f32.mrb[0].mxu0
        %608 = vmatprep.mubr.f32.mxu0 0.0
        %609 = vmatmul.mubr.f32.gmra.mrb[0].mxu0 %v397
        %v610 = vpop.f32.mrb[0].mxu0
        %v611 = vadd.f32 0.0, %v610
        %v612 = vpop.f32.mrb[0].mxu0
        %613 = vmatprep.mubr.f32.mxu0 0.0
        %614 = vmatmul.mubr.f32.gmra.mrb[0].mxu0 %v400
        %v615 = vpop.f32.mrb[0].mxu0
        %v616 = vadd.f32 0.0, %v615
        %v617 = vpop.f32.mrb[0].mxu0
        %618 = vmatprep.mubr.f32.mxu0 0.0
        %619 = vmatmul.mubr.f32.gmra.mrb[0].mxu0 %v403
        %v620 = vpop.f32.mrb[0].mxu0
        %v621 = vadd.f32 0.0, %v620
        %v622 = vpop.f32.mrb[0].mxu0
        %623 = vmatprep.mubr.f32.mxu0 0.0
        %624 = vmatmul.mubr.f32.gmra.mrb[0].mxu0 %v406
        %v625 = vpop.f32.mrb[0].mxu0
        %v626 = vadd.f32 0.0, %v625
        %v627 = vpop.f32.mrb[0].mxu0
        %628 = vmatprep.mubr.f32.mxu0 0.0
        %629 = vmatmul.mubr.f32.gmra.mrb[0].mxu0 %v409
        %v630 = vpop.f32.mrb[0].mxu0
        %v631 = vadd.f32 0.0, %v630
        %v632 = vpop.f32.mrb[0].mxu0
        %633 = vmatprep.mubr.f32.mxu0 0.0
        %634 = vmatmul.mubr.f32.gmra.mrb[0].mxu0 %v412
        %v635 = vpop.f32.mrb[0].mxu0
        %v636 = vadd.f32 0.0, %v635
        %v637 = vpop.f32.mrb[0].mxu0
        %638 = vmatprep.mubr.f32.mxu0 0.0
        %639 = vmatmul.mubr.f32.gmra.mrb[0].mxu0 %v415
        %v640 = vpop.f32.mrb[0].mxu0
        %v641 = vadd.f32 0.0, %v640
        %v642 = vpop.f32.mrb[0].mxu0
        %643 = vmatprep.mubr.f32.mxu0 0.0
        %644 = vmatmul.mubr.f32.gmra.mrb[0].mxu0 %v418
        %v645 = vpop.f32.mrb[0].mxu0
        %v646 = vadd.f32 0.0, %v645
        %v647 = vpop.f32.mrb[0].mxu0
        %648 = vmatprep.mubr.f32.mxu0 0.0
        %649 = vmatmul.mubr.f32.gmra.mrb[0].mxu0 %v421
        %v650 = vpop.f32.mrb[0].mxu0
        %v651 = vadd.f32 0.0, %v650
        %v652 = vpop.f32.mrb[0].mxu0
        %653 = vmatprep.mubr.f32.mxu0 0.0
        %654 = vmatmul.mubr.f32.gmra.mrb[0].mxu0 %v424
        %v655 = vpop.f32.mrb[0].mxu0
        %v656 = vadd.f32 0.0, %v655
        %v657 = vpop.f32.mrb[0].mxu0
        %658 = vmatprep.mubr.f32.mxu0 0.0
        %659 = vmatmul.mubr.f32.gmra.mrb[0].mxu0 %v427
        %v660 = vpop.f32.mrb[0].mxu0
        %v661 = vadd.f32 0.0, %v660
        %v662 = vpop.f32.mrb[0].mxu0
        %663 = vmatprep.mubr.f32.mxu0 0.0
        %664 = vmatmul.mubr.f32.gmra.mrb[0].mxu0 %v430
        %v665 = vpop.f32.mrb[0].mxu0
        %v666 = vadd.f32 0.0, %v665
        %v667 = vpop.f32.mrb[0].mxu0
        %668 = vmatprep.mubr.f32.mxu0 0.0
        %669 = vmatmul.mubr.f32.gmra.mrb[0].mxu0 %v433
        %v670 = vpop.f32.mrb[0].mxu0
        %v671 = vadd.f32 0.0, %v670
        %v672 = vpop.f32.mrb[0].mxu0
        %673 = vmatprep.mubr.f32.mxu0 0.0
        %674 = vmatmul.mubr.f32.gmra.mrb[0].mxu0 %v436
        %v675 = vpop.f32.mrb[0].mxu0
        %v676 = vadd.f32 0.0, %v675
        %v677 = vpop.f32.mrb[0].mxu0
        %678 = vmatprep.mubr.f32.mxu0 0.0
        %679 = vmatmul.mubr.f32.gmra.mrb[0].mxu0 %v439
        %v680 = vpop.f32.mrb[0].mxu0
        %v681 = vadd.f32 0.0, %v680
        %v682 = vpop.f32.mrb[0].mxu0
        %683 = vmatprep.mubr.f32.mxu0 0.0
        %684 = vmatmul.mubr.f32.gmra.mrb[0].mxu0 %v442
        %v685 = vpop.f32.mrb[0].mxu0
        %v686 = vadd.f32 0.0, %v685
        %v687 = vpop.f32.mrb[0].mxu0
        %688 = vmatprep.mubr.f32.mxu0 0.0
        %689 = vmatmul.mubr.f32.gmra.mrb[0].mxu0 %v445
        %v690 = vpop.f32.mrb[0].mxu0
        %v691 = vadd.f32 0.0, %v690
        %v692 = vpop.f32.mrb[0].mxu0
        %693 = vmatprep.mubr.f32.mxu0 0.0
        %694 = vmatmul.mubr.f32.gmra.mrb[0].mxu0 %v448
        %v695 = vpop.f32.mrb[0].mxu0
        %v696 = vadd.f32 0.0, %v695
        %v697 = vpop.f32.mrb[0].mxu0
        %698 = vmatprep.mubr.f32.mxu0 0.0
        %699 = vmatmul.mubr.f32.gmra.mrb[0].mxu0 %v451
        %v700 = vpop.f32.mrb[0].mxu0
        %v701 = vadd.f32 0.0, %v700
        %v702 = vpop.f32.mrb[0].mxu0
        %703 = vmatprep.mubr.f32.mxu0 0.0
        %704 = vmatmul.mubr.f32.gmra.mrb[0].mxu0 %v454
        %v705 = vpop.f32.mrb[0].mxu0
        %v706 = vadd.f32 0.0, %v705
        %v707 = vpop.f32.mrb[0].mxu0
        %708 = vmatprep.mubr.f32.mxu0 0.0
        %709 = vmatmul.mubr.f32.gmra.mrb[0].mxu0 %v457
        %v710 = vpop.f32.mrb[0].mxu0
        %v711 = vadd.f32 0.0, %v710
        %v712 = vpop.f32.mrb[0].mxu0
        %713 = vmatprep.mubr.f32.mxu0 0.0
        %714 = vmatmul.mubr.f32.gmra.mrb[0].mxu0 %v460
        %v715 = vpop.f32.mrb[0].mxu0
        %v716 = vadd.f32 0.0, %v715
        %v717 = vpop.f32.mrb[0].mxu0
        %718 = vmatprep.mubr.f32.mxu0 0.0
        %719 = vmatmul.mubr.f32.gmra.mrb[0].mxu0 %v463
        %v720 = vpop.f32.mrb[0].mxu0
        %v721 = vadd.f32 0.0, %v720
        %v722 = vpop.f32.mrb[0].mxu0
        %723 = vmatprep.mubr.f32.mxu0 0.0
        %724 = vmatmul.mubr.f32.gmra.mrb[0].mxu0 %v466
        %v725 = vpop.f32.mrb[0].mxu0
        %v726 = vadd.f32 0.0, %v725
        %v727 = vpop.f32.mrb[0].mxu0
        %728 = vmatprep.mubr.f32.mxu0 0.0
        %729 = vmatmul.mubr.f32.gmra.mrb[0].mxu0 %v469
        %v730 = vpop.f32.mrb[0].mxu0
        %v731 = vadd.f32 0.0, %v730
        %v732 = vpop.f32.mrb[0].mxu0
        %733 = vmatprep.mubr.f32.mxu0 0.0
        %734 = vmatmul.mubr.f32.gmra.mrb[0].mxu0 %v472
        %v735 = vpop.f32.mrb[0].mxu0
        %v736 = vadd.f32 0.0, %v735
        %v737 = vpop.f32.mrb[0].mxu0
        %738 = vmatprep.mubr.f32.mxu0 0.0
        %739 = vmatmul.mubr.f32.gmra.mrb[0].mxu0 %v475
        %v740 = vpop.f32.mrb[0].mxu0
        %v741 = vadd.f32 0.0, %v740
        %v742 = vpop.f32.mrb[0].mxu0
        %743 = vmatprep.mubr.f32.mxu0 0.0
        %744 = vmatmul.mubr.f32.gmra.mrb[0].mxu0 %v478
        %v745 = vpop.f32.mrb[0].mxu0
        %v746 = vadd.f32 0.0, %v745
        %v747 = vpop.f32.mrb[0].mxu0
        %748 = vmatprep.mubr.f32.mxu0 0.0
        %749 = vmatmul.mubr.f32.gmra.mrb[0].mxu0 %v481
        %v750 = vpop.f32.mrb[0].mxu0
        %v751 = vadd.f32 0.0, %v750
        %v752 = vpop.f32.mrb[0].mxu0
        %753 = vmatprep.mubr.f32.mxu0 0.0
        %754 = vmatmul.mubr.f32.gmra.mrb[0].mxu0 %v484
        %v755 = vpop.f32.mrb[0].mxu0
        %v756 = vadd.f32 0.0, %v755
        %v757 = vpop.f32.mrb[0].mxu0
        %758 = vmatprep.mubr.f32.mxu0 0.0
        %759 = vmatmul.mubr.f32.gmra.mrb[0].mxu0 %v487
        %v760 = vpop.f32.mrb[0].mxu0
        %v761 = vadd.f32 0.0, %v760
        %v762 = vpop.f32.mrb[0].mxu0
        %763 = vmatprep.mubr.f32.mxu0 0.0
        %764 = vmatmul.mubr.f32.gmra.mrb[0].mxu0 %v490
        %v765 = vpop.f32.mrb[0].mxu0
        %v766 = vadd.f32 0.0, %v765
        %v767 = vpop.f32.mrb[0].mxu0
        %768 = vmatprep.mubr.f32.mxu0 0.0
        %769 = vmatmul.mubr.f32.gmra.mrb[0].mxu0 %v493
        %v770 = vpop.f32.mrb[0].mxu0
        %v771 = vadd.f32 0.0, %v770
        %v772 = vpop.f32.mrb[0].mxu0
        %773 = vmatprep.mubr.f32.mxu0 0.0
        %774 = vmatmul.mubr.f32.gmra.mrb[0].mxu0 %v496
        %v775 = vpop.f32.mrb[0].mxu0
        %v776 = vadd.f32 0.0, %v775
        %v777 = vpop.f32.mrb[0].mxu0
        %778 = vmatprep.mubr.f32.mxu0 0.0
        %779 = vmatmul.mubr.f32.gmra.mrb[0].mxu0 %v499
        %v780 = vpop.f32.mrb[0].mxu0
        %v781 = vadd.f32 0.0, %v780
        %v782 = vpop.f32.mrb[0].mxu0
        %783 = vmatprep.mubr.f32.mxu0 0.0
        %784 = vmatmul.mubr.f32.gmra.mrb[0].mxu0 %v502
        %v785 = vpop.f32.mrb[0].mxu0
        %v786 = vadd.f32 0.0, %v785
        %v787 = vpop.f32.mrb[0].mxu0
        %788 = vmatprep.mubr.f32.mxu0 0.0
        %789 = vmatmul.mubr.f32.gmra.mrb[0].mxu0 %v505
        %v790 = vpop.f32.mrb[0].mxu0
        %v791 = vadd.f32 0.0, %v790
        %v792 = vpop.f32.mrb[0].mxu0
        %793 = vmatprep.mubr.f32.mxu0 0.0
        %794 = vmatmul.mubr.f32.gmra.mrb[0].mxu0 %v508
        %v795 = vpop.f32.mrb[0].mxu0
        %v796 = vadd.f32 0.0, %v795
        %v797 = vpop.f32.mrb[0].mxu0
        %798 = vmatprep.mubr.f32.mxu0 0.0
        %799 = vmatmul.mubr.f32.gmra.mrb[0].mxu0 %v511
        %v800 = vpop.f32.mrb[0].mxu0
        %v801 = vadd.f32 0.0, %v800
        %v802 = vpop.f32.mrb[0].mxu0
        %803 = vmatprep.mubr.f32.mxu0 0.0
        %804 = vmatmul.mubr.f32.gmra.mrb[0].mxu0 %v514
        %v805 = vpop.f32.mrb[0].mxu0
        %v806 = vadd.f32 0.0, %v805
        %v807 = vpop.f32.mrb[0].mxu0
        %808 = vmatprep.mubr.f32.mxu0 0.0
        %809 = vmatmul.mubr.f32.gmra.mrb[0].mxu0 %v517
        %v810 = vpop.f32.mrb[0].mxu0
        %v811 = vadd.f32 0.0, %v810
        %v812 = vpop.f32.mrb[0].mxu0
        %813 = vmatprep.mubr.f32.mxu0 0.0
        %814 = vmatmul.mubr.f32.gmra.mrb[0].mxu0 %v520
        %v815 = vpop.f32.mrb[0].mxu0
        %v816 = vadd.f32 0.0, %v815
        %v817 = vpop.f32.mrb[0].mxu0
        %818 = vmatprep.mubr.f32.mxu0 0.0
        %819 = vmatmul.mubr.f32.gmra.mrb[0].mxu0 %v523
        %v820 = vpop.f32.mrb[0].mxu0
        %v821 = vadd.f32 0.0, %v820
        %v822 = vpop.f32.mrb[0].mxu0
        %823 = vmatprep.mubr.f32.mxu0 0.0
        %824 = vmatmul.mubr.f32.gmra.mrb[0].mxu0 %v526
        %v825 = vpop.f32.mrb[0].mxu0
        %v826 = vadd.f32 0.0, %v825
        %v827 = vpop.f32.mrb[0].mxu0
        %828 = vmatprep.mubr.f32.mxu0 0.0
        %829 = vmatmul.mubr.f32.gmra.mrb[0].mxu0 %v529
        %v830 = vpop.f32.mrb[0].mxu0
        %v831 = vadd.f32 0.0, %v830
        %v832 = vpop.f32.mrb[0].mxu0
        %833 = vmatprep.mubr.f32.mxu0 0.0
        %834 = vmatmul.mubr.f32.gmra.mrb[0].mxu0 %v532
        %v835 = vpop.f32.mrb[0].mxu0
        %v836 = vadd.f32 0.0, %v835
        %v837 = vpop.f32.mrb[0].mxu0
        %838 = vdwg.mxu0
        %v839 = vld [vmem:[#allocation6] sm:$0xff]
        %v840 = vld [vmem:[#allocation6 + $0x8] sm:$0xff]
        %v841 = vld [vmem:[#allocation6 + $0x10] sm:$0xff]
        %v842 = vld [vmem:[#allocation6 + $0x18] sm:$0xff]
        %v843 = vld [vmem:[#allocation6 + $0x20] sm:$0xff]
        %v844 = vld [vmem:[#allocation6 + $0x28] sm:$0xff]
        %v845 = vld [vmem:[#allocation6 + $0x30] sm:$0xff]
        %v846 = vld [vmem:[#allocation6 + $0x38] sm:$0xff]
        %v847 = vld [vmem:[#allocation6 + $0x40] sm:$0xff]
        %v848 = vld [vmem:[#allocation6 + $0x48] sm:$0xff]
        %v849 = vld [vmem:[#allocation6 + $0x50] sm:$0xff]
        %v850 = vld [vmem:[#allocation6 + $0x58] sm:$0xff]
        %v851 = vld [vmem:[#allocation6 + $0x60] sm:$0xff]
        %v852 = vld [vmem:[#allocation6 + $0x68] sm:$0xff]
        %v853 = vld [vmem:[#allocation6 + $0x70] sm:$0xff]
        %v854 = vld [vmem:[#allocation6 + $0x78] sm:$0xff]
        %v855 = vld [vmem:[#allocation6 + $0x80] sm:$0xff]
        %v856 = vld [vmem:[#allocation6 + $0x88] sm:$0xff]
        %v857 = vld [vmem:[#allocation6 + $0x90] sm:$0xff]
        %v858 = vld [vmem:[#allocation6 + $0x98] sm:$0xff]
        %v859 = vld [vmem:[#allocation6 + $0xa0] sm:$0xff]
        %v860 = vld [vmem:[#allocation6 + $0xa8] sm:$0xff]
        %v861 = vld [vmem:[#allocation6 + $0xb0] sm:$0xff]
        %v862 = vld [vmem:[#allocation6 + $0xb8] sm:$0xff]
        %v863 = vld [vmem:[#allocation6 + $0xc0] sm:$0xff]
        %v864 = vld [vmem:[#allocation6 + $0xc8] sm:$0xff]
        %v865 = vld [vmem:[#allocation6 + $0xd0] sm:$0xff]
        %v866 = vld [vmem:[#allocation6 + $0xd8] sm:$0xff]
        %v867 = vld [vmem:[#allocation6 + $0xe0] sm:$0xff]
        %v868 = vld [vmem:[#allocation6 + $0xe8] sm:$0xff]
        %v869 = vld [vmem:[#allocation6 + $0xf0] sm:$0xff]
        %v870 = vld [vmem:[#allocation6 + $0xf8] sm:$0xff]
        %v871 = vld [vmem:[#allocation6 + $0x100] sm:$0xff]
        %v872 = vld [vmem:[#allocation6 + $0x108] sm:$0xff]
        %v873 = vld [vmem:[#allocation6 + $0x110] sm:$0xff]
        %v874 = vld [vmem:[#allocation6 + $0x118] sm:$0xff]
        %v875 = vld [vmem:[#allocation6 + $0x120] sm:$0xff]
        %v876 = vld [vmem:[#allocation6 + $0x128] sm:$0xff]
        %v877 = vld [vmem:[#allocation6 + $0x130] sm:$0xff]
        %v878 = vld [vmem:[#allocation6 + $0x138] sm:$0xff]
        %v879 = vld [vmem:[#allocation6 + $0x140] sm:$0xff]
        %v880 = vld [vmem:[#allocation6 + $0x148] sm:$0xff]
        %v881 = vld [vmem:[#allocation6 + $0x150] sm:$0xff]
        %v882 = vld [vmem:[#allocation6 + $0x158] sm:$0xff]
        %v883 = vld [vmem:[#allocation6 + $0x160] sm:$0xff]
        %v884 = vld [vmem:[#allocation6 + $0x168] sm:$0xff]
        %v885 = vld [vmem:[#allocation6 + $0x170] sm:$0xff]
        %v886 = vld [vmem:[#allocation6 + $0x178] sm:$0xff]
        %v887 = vld [vmem:[#allocation6 + $0x180] sm:$0xff]
        %v888 = vld [vmem:[#allocation6 + $0x188] sm:$0xff]
        %v889 = vld [vmem:[#allocation6 + $0x190] sm:$0xff]
        %v890 = vld [vmem:[#allocation6 + $0x198] sm:$0xff]
        %v891 = vld [vmem:[#allocation6 + $0x1a0] sm:$0xff]
        %v892 = vld [vmem:[#allocation6 + $0x1a8] sm:$0xff]
        %v893 = vld [vmem:[#allocation6 + $0x1b0] sm:$0xff]
        %v894 = vld [vmem:[#allocation6 + $0x1b8] sm:$0xff]
        %v895 = vld [vmem:[#allocation6 + $0x1c0] sm:$0xff]
        %v896 = vld [vmem:[#allocation6 + $0x1c8] sm:$0xff]
        %v897 = vld [vmem:[#allocation6 + $0x1d0] sm:$0xff]
        %v898 = vld [vmem:[#allocation6 + $0x1d8] sm:$0xff]
        %v899 = vld [vmem:[#allocation6 + $0x1e0] sm:$0xff]
        %v900 = vld [vmem:[#allocation6 + $0x1e8] sm:$0xff]
        %v901 = vld [vmem:[#allocation6 + $0x1f0] sm:$0xff]
        %v902 = vld [vmem:[#allocation6 + $0x1f8] sm:$0xff]
        %v903 = vld [vmem:[#allocation6 + $0x200] sm:$0xff]
        %v904 = vld [vmem:[#allocation6 + $0x208] sm:$0xff]
        %v905 = vld [vmem:[#allocation6 + $0x210] sm:$0xff]
        %v906 = vld [vmem:[#allocation6 + $0x218] sm:$0xff]
        %v907 = vld [vmem:[#allocation6 + $0x220] sm:$0xff]
        %v908 = vld [vmem:[#allocation6 + $0x228] sm:$0xff]
        %v909 = vld [vmem:[#allocation6 + $0x230] sm:$0xff]
        %v910 = vld [vmem:[#allocation6 + $0x238] sm:$0xff]
        %v911 = vld [vmem:[#allocation6 + $0x240] sm:$0xff]
        %v912 = vld [vmem:[#allocation6 + $0x248] sm:$0xff]
        %v913 = vld [vmem:[#allocation6 + $0x250] sm:$0xff]
        %v914 = vld [vmem:[#allocation6 + $0x258] sm:$0xff]
        %v915 = vld [vmem:[#allocation6 + $0x260] sm:$0xff]
        %v916 = vld [vmem:[#allocation6 + $0x268] sm:$0xff]
        %v917 = vld [vmem:[#allocation6 + $0x270] sm:$0xff]
        %v918 = vld [vmem:[#allocation6 + $0x278] sm:$0xff]
        %v919 = vld [vmem:[#allocation6 + $0x280] sm:$0xff]
        %v920 = vld [vmem:[#allocation6 + $0x288] sm:$0xff]
        %v921 = vld [vmem:[#allocation6 + $0x290] sm:$0xff]
        %v922 = vld [vmem:[#allocation6 + $0x298] sm:$0xff]
        %v923 = vld [vmem:[#allocation6 + $0x2a0] sm:$0xff]
        %v924 = vld [vmem:[#allocation6 + $0x2a8] sm:$0xff]
        %v925 = vld [vmem:[#allocation6 + $0x2b0] sm:$0xff]
        %v926 = vld [vmem:[#allocation6 + $0x2b8] sm:$0xff]
        %v927 = vld [vmem:[#allocation6 + $0x2c0] sm:$0xff]
        %v928 = vld [vmem:[#allocation6 + $0x2c8] sm:$0xff]
        %v929 = vld [vmem:[#allocation6 + $0x2d0] sm:$0xff]
        %v930 = vld [vmem:[#allocation6 + $0x2d8] sm:$0xff]
        %v931 = vld [vmem:[#allocation6 + $0x2e0] sm:$0xff]
        %v932 = vld [vmem:[#allocation6 + $0x2e8] sm:$0xff]
        %v933 = vld [vmem:[#allocation6 + $0x2f0] sm:$0xff]
        %v934 = vld [vmem:[#allocation6 + $0x2f8] sm:$0xff]
        %v935 = vld [vmem:[#allocation6 + $0x300] sm:$0xff]
        %v936 = vld [vmem:[#allocation6 + $0x308] sm:$0xff]
        %v937 = vld [vmem:[#allocation6 + $0x310] sm:$0xff]
        %938 = vmatprep.subr.mxu0 0.0
        %939 = vmatpush1.msra.mxu0 %v601
        %940 = vmatprep.subr.mxu0 0.0
        %941 = vmatpush1.msra.mxu0 %v606
        %942 = vmatprep.subr.mxu0 0.0
        %943 = vmatpush1.msra.mxu0 %v611
        %944 = vmatprep.subr.mxu0 0.0
        %945 = vmatpush1.msra.mxu0 %v616
        %946 = vmatprep.subr.mxu0 0.0
        %947 = vmatpush1.msra.mxu0 %v621
        %948 = vmatprep.subr.mxu0 0.0
        %949 = vmatpush1.msra.mxu0 %v626
        %950 = vmatprep.subr.mxu0 0.0
        %951 = vmatpush1.msra.mxu0 %v631
        %952 = vmatprep.subr.mxu0 0.0
        %953 = vmatpush1.msra.mxu0 %v636
        %954 = vmatprep.subr.mxu0 0.0
        %955 = vmatpush1.msra.mxu0 %v641
        %956 = vmatprep.subr.mxu0 0.0
        %957 = vmatpush1.msra.mxu0 %v646
        %958 = vmatprep.subr.mxu0 0.0
        %959 = vmatpush1.msra.mxu0 %v651
        %960 = vmatprep.subr.mxu0 0.0
        %961 = vmatpush1.msra.mxu0 %v656
        %962 = vmatprep.subr.mxu0 0.0
        %963 = vmatpush1.msra.mxu0 %v661
        %964 = vmatprep.subr.mxu0 0.0
        %965 = vmatpush1.msra.mxu0 %v666
        %966 = vmatprep.subr.mxu0 0.0
        %967 = vmatpush1.msra.mxu0 %v671
        %968 = vmatprep.subr.mxu0 0.0
        %969 = vmatpush1.msra.mxu0 %v676
        %970 = vmatprep.subr.mxu0 0.0
        %971 = vmatpush1.msra.mxu0 %v681
        %972 = vmatprep.subr.mxu0 0.0
        %973 = vmatpush1.msra.mxu0 %v686
        %974 = vmatprep.subr.mxu0 0.0
        %975 = vmatpush1.msra.mxu0 %v691
        %976 = vmatprep.subr.mxu0 0.0
        %977 = vmatpush1.msra.mxu0 %v696
        %978 = vmatprep.subr.mxu0 0.0
        %979 = vmatpush1.msra.mxu0 %v701
        %980 = vmatprep.subr.mxu0 0.0
        %981 = vmatpush1.msra.mxu0 %v706
        %982 = vmatprep.subr.mxu0 0.0
        %983 = vmatpush1.msra.mxu0 %v711
        %984 = vmatprep.subr.mxu0 0.0
        %985 = vmatpush1.msra.mxu0 %v716
        %986 = vmatprep.subr.mxu0 0.0
        %987 = vmatpush1.msra.mxu0 %v721
        %988 = vmatprep.subr.mxu0 0.0
        %989 = vmatpush1.msra.mxu0 %v726
        %990 = vmatprep.subr.mxu0 0.0
        %991 = vmatpush1.msra.mxu0 %v731
        %992 = vmatprep.subr.mxu0 0.0
        %993 = vmatpush1.msra.mxu0 %v736
        %994 = vmatprep.subr.mxu0 0.0
        %995 = vmatpush1.msra.mxu0 %v741
        %996 = vmatprep.subr.mxu0 0.0
        %997 = vmatpush1.msra.mxu0 %v746
        %998 = vmatprep.subr.mxu0 0.0
        %999 = vmatpush1.msra.mxu0 %v751
        %1000 = vmatprep.subr.mxu0 0.0
        %1001 = vmatpush1.msra.mxu0 %v756
        %1002 = vmatprep.mubr.f32.mxu0 %v840
        %1003 = vmatmul.mubr.f32.gmra.mrb[0].mxu0 %v839
        %v1004 = vpop.f32.mrb[0].mxu0
        %v1005 = vadd.f32 0.0, %v1004
        %v1006 = vpop.f32.mrb[0].mxu0
        %1007 = vmatprep.mubr.f32.mxu0 %v843
        %1008 = vmatmul.mubr.f32.gmra.mrb[0].mxu0 %v842
        %v1009 = vpop.f32.mrb[0].mxu0
        %v1010 = vadd.f32 0.0, %v1009
        %v1011 = vpop.f32.mrb[0].mxu0
        %1012 = vmatprep.mubr.f32.mxu0 %v846
        %1013 = vmatmul.mubr.f32.gmra.mrb[0].mxu0 %v845
        %v1014 = vpop.f32.mrb[0].mxu0
        %v1015 = vadd.f32 0.0, %v1014
        %v1016 = vpop.f32.mrb[0].mxu0
        %1017 = vmatprep.mubr.f32.mxu0 %v849
        %1018 = vmatmul.mubr.f32.gmra.mrb[0].mxu0 %v848
        %v1019 = vpop.f32.mrb[0].mxu0
        %v1020 = vadd.f32 0.0, %v1019
        %v1021 = vpop.f32.mrb[0].mxu0
        %1022 = vmatprep.mubr.f32.mxu0 %v852
        %1023 = vmatmul.mubr.f32.gmra.mrb[0].mxu0 %v851
        %v1024 = vpop.f32.mrb[0].mxu0
        %v1025 = vadd.f32 0.0, %v1024
        %v1026 = vpop.f32.mrb[0].mxu0
        %1027 = vmatprep.mubr.f32.mxu0 %v855
        %1028 = vmatmul.mubr.f32.gmra.mrb[0].mxu0 %v854
        %v1029 = vpop.f32.mrb[0].mxu0
        %v1030 = vadd.f32 0.0, %v1029
        %v1031 = vpop.f32.mrb[0].mxu0
        %1032 = vmatprep.mubr.f32.mxu0 %v858
        %1033 = vmatmul.mubr.f32.gmra.mrb[0].mxu0 %v857
        %v1034 = vpop.f32.mrb[0].mxu0
        %v1035 = vadd.f32 0.0, %v1034
        %v1036 = vpop.f32.mrb[0].mxu0
        %1037 = vmatprep.mubr.f32.mxu0 %v861
        %1038 = vmatmul.mubr.f32.gmra.mrb[0].mxu0 %v860
        %v1039 = vpop.f32.mrb[0].mxu0
        %v1040 = vadd.f32 0.0, %v1039
        %v1041 = vpop.f32.mrb[0].mxu0
        %1042 = vmatprep.mubr.f32.mxu0 %v864
        %1043 = vmatmul.mubr.f32.gmra.mrb[0].mxu0 %v863
        %v1044 = vpop.f32.mrb[0].mxu0
        %v1045 = vadd.f32 0.0, %v1044
        %v1046 = vpop.f32.mrb[0].mxu0
        %1047 = vmatprep.mubr.f32.mxu0 %v867
        %1048 = vmatmul.mubr.f32.gmra.mrb[0].mxu0 %v866
        %v1049 = vpop.f32.mrb[0].mxu0
        %v1050 = vadd.f32 0.0, %v1049
        %v1051 = vpop.f32.mrb[0].mxu0
        %1052 = vmatprep.mubr.f32.mxu0 %v870
        %1053 = vmatmul.mubr.f32.gmra.mrb[0].mxu0 %v869
        %v1054 = vpop.f32.mrb[0].mxu0
        %v1055 = vadd.f32 0.0, %v1054
        %v1056 = vpop.f32.mrb[0].mxu0
        %1057 = vmatprep.mubr.f32.mxu0 %v873
        %1058 = vmatmul.mubr.f32.gmra.mrb[0].mxu0 %v872
        %v1059 = vpop.f32.mrb[0].mxu0
        %v1060 = vadd.f32 0.0, %v1059
        %v1061 = vpop.f32.mrb[0].mxu0
        %1062 = vmatprep.mubr.f32.mxu0 %v876
        %1063 = vmatmul.mubr.f32.gmra.mrb[0].mxu0 %v875
        %v1064 = vpop.f32.mrb[0].mxu0
        %v1065 = vadd.f32 0.0, %v1064
        %v1066 = vpop.f32.mrb[0].mxu0
        %1067 = vmatprep.mubr.f32.mxu0 %v879
        %1068 = vmatmul.mubr.f32.gmra.mrb[0].mxu0 %v878
        %v1069 = vpop.f32.mrb[0].mxu0
        %v1070 = vadd.f32 0.0, %v1069
        %v1071 = vpop.f32.mrb[0].mxu0
        %1072 = vmatprep.mubr.f32.mxu0 %v882
        %1073 = vmatmul.mubr.f32.gmra.mrb[0].mxu0 %v881
        %v1074 = vpop.f32.mrb[0].mxu0
        %v1075 = vadd.f32 0.0, %v1074
        %v1076 = vpop.f32.mrb[0].mxu0
        %1077 = vmatprep.mubr.f32.mxu0 %v885
        %1078 = vmatmul.mubr.f32.gmra.mrb[0].mxu0 %v884
        %v1079 = vpop.f32.mrb[0].mxu0
        %v1080 = vadd.f32 0.0, %v1079
        %v1081 = vpop.f32.mrb[0].mxu0
        %1082 = vmatprep.mubr.f32.mxu0 %v888
        %1083 = vmatmul.mubr.f32.gmra.mrb[0].mxu0 %v887
        %v1084 = vpop.f32.mrb[0].mxu0
        %v1085 = vadd.f32 0.0, %v1084
        %v1086 = vpop.f32.mrb[0].mxu0
        %1087 = vmatprep.mubr.f32.mxu0 %v891
        %1088 = vmatmul.mubr.f32.gmra.mrb[0].mxu0 %v890
        %v1089 = vpop.f32.mrb[0].mxu0
        %v1090 = vadd.f32 0.0, %v1089
        %v1091 = vpop.f32.mrb[0].mxu0
        %1092 = vmatprep.mubr.f32.mxu0 %v894
        %1093 = vmatmul.mubr.f32.gmra.mrb[0].mxu0 %v893
        %v1094 = vpop.f32.mrb[0].mxu0
        %v1095 = vadd.f32 0.0, %v1094
        %v1096 = vpop.f32.mrb[0].mxu0
        %1097 = vmatprep.mubr.f32.mxu0 %v897
        %1098 = vmatmul.mubr.f32.gmra.mrb[0].mxu0 %v896
        %v1099 = vpop.f32.mrb[0].mxu0
        %v1100 = vadd.f32 0.0, %v1099
        %v1101 = vpop.f32.mrb[0].mxu0
        %1102 = vmatprep.mubr.f32.mxu0 %v900
        %1103 = vmatmul.mubr.f32.gmra.mrb[0].mxu0 %v899
        %v1104 = vpop.f32.mrb[0].mxu0
        %v1105 = vadd.f32 0.0, %v1104
        %v1106 = vpop.f32.mrb[0].mxu0
        %1107 = vmatprep.mubr.f32.mxu0 %v903
        %1108 = vmatmul.mubr.f32.gmra.mrb[0].mxu0 %v902
        %v1109 = vpop.f32.mrb[0].mxu0
        %v1110 = vadd.f32 0.0, %v1109
        %v1111 = vpop.f32.mrb[0].mxu0
        %1112 = vmatprep.mubr.f32.mxu0 %v906
        %1113 = vmatmul.mubr.f32.gmra.mrb[0].mxu0 %v905
        %v1114 = vpop.f32.mrb[0].mxu0
        %v1115 = vadd.f32 0.0, %v1114
        %v1116 = vpop.f32.mrb[0].mxu0
        %1117 = vmatprep.mubr.f32.mxu0 %v909
        %1118 = vmatmul.mubr.f32.gmra.mrb[0].mxu0 %v908
        %v1119 = vpop.f32.mrb[0].mxu0
        %v1120 = vadd.f32 0.0, %v1119
        %v1121 = vpop.f32.mrb[0].mxu0
        %1122 = vmatprep.mubr.f32.mxu0 %v912
        %1123 = vmatmul.mubr.f32.gmra.mrb[0].mxu0 %v911
        %v1124 = vpop.f32.mrb[0].mxu0
        %v1125 = vadd.f32 0.0, %v1124
        %v1126 = vpop.f32.mrb[0].mxu0
        %1127 = vmatprep.mubr.f32.mxu0 %v915
        %1128 = vmatmul.mubr.f32.gmra.mrb[0].mxu0 %v914
        %v1129 = vpop.f32.mrb[0].mxu0
        %v1130 = vadd.f32 0.0, %v1129
        %v1131 = vpop.f32.mrb[0].mxu0
        %1132 = vmatprep.mubr.f32.mxu0 %v918
        %1133 = vmatmul.mubr.f32.gmra.mrb[0].mxu0 %v917
        %v1134 = vpop.f32.mrb[0].mxu0
        %v1135 = vadd.f32 0.0, %v1134
        %v1136 = vpop.f32.mrb[0].mxu0
        %1137 = vmatprep.mubr.f32.mxu0 %v921
        %1138 = vmatmul.mubr.f32.gmra.mrb[0].mxu0 %v920
        %v1139 = vpop.f32.mrb[0].mxu0
        %v1140 = vadd.f32 0.0, %v1139
        %v1141 = vpop.f32.mrb[0].mxu0
        %1142 = vmatprep.mubr.f32.mxu0 %v924
        %1143 = vmatmul.mubr.f32.gmra.mrb[0].mxu0 %v923
        %v1144 = vpop.f32.mrb[0].mxu0
        %v1145 = vadd.f32 0.0, %v1144
        %v1146 = vpop.f32.mrb[0].mxu0
        %1147 = vmatprep.mubr.f32.mxu0 %v927
        %1148 = vmatmul.mubr.f32.gmra.mrb[0].mxu0 %v926
        %v1149 = vpop.f32.mrb[0].mxu0
        %v1150 = vadd.f32 0.0, %v1149
        %v1151 = vpop.f32.mrb[0].mxu0
        %1152 = vmatprep.mubr.f32.mxu0 %v930
        %1153 = vmatmul.mubr.f32.gmra.mrb[0].mxu0 %v929
        %v1154 = vpop.f32.mrb[0].mxu0
        %v1155 = vadd.f32 0.0, %v1154
        %v1156 = vpop.f32.mrb[0].mxu0
        %1157 = vmatprep.mubr.f32.mxu0 %v933
        %1158 = vmatmul.mubr.f32.gmra.mrb[0].mxu0 %v932
        %v1159 = vpop.f32.mrb[0].mxu0
        %v1160 = vadd.f32 0.0, %v1159
        %v1161 = vpop.f32.mrb[0].mxu0
        %1162 = vmatprep.mubr.f32.mxu0 %v936
        %1163 = vmatmul.mubr.f32.gmra.mrb[0].mxu0 %v935
        %v1164 = vpop.f32.mrb[0].mxu0
        %v1165 = vadd.f32 0.0, %v1164
        %v1166 = vpop.f32.mrb[0].mxu0
        %1167 = vdwg.mxu0
        %1168 = vmatprep.subr.mxu0 0.0
        %1169 = vmatpush1.msra.mxu0 %v761
        %1170 = vmatprep.subr.mxu0 0.0
        %1171 = vmatpush1.msra.mxu0 %v766
        %1172 = vmatprep.subr.mxu0 0.0
        %1173 = vmatpush1.msra.mxu0 %v771
        %1174 = vmatprep.subr.mxu0 0.0
        %1175 = vmatpush1.msra.mxu0 %v776
        %1176 = vmatprep.subr.mxu0 0.0
        %1177 = vmatpush1.msra.mxu0 %v781
        %1178 = vmatprep.subr.mxu0 0.0
        %1179 = vmatpush1.msra.mxu0 %v786
        %1180 = vmatprep.subr.mxu0 0.0
        %1181 = vmatpush1.msra.mxu0 %v791
        %1182 = vmatprep.subr.mxu0 0.0
        %1183 = vmatpush1.msra.mxu0 %v796
        %1184 = vmatprep.subr.mxu0 0.0
        %1185 = vmatpush1.msra.mxu0 %v801
        %1186 = vmatprep.subr.mxu0 0.0
        %1187 = vmatpush1.msra.mxu0 %v806
        %1188 = vmatprep.subr.mxu0 0.0
        %1189 = vmatpush1.msra.mxu0 %v811
        %1190 = vmatprep.subr.mxu0 0.0
        %1191 = vmatpush1.msra.mxu0 %v816
        %1192 = vmatprep.subr.mxu0 0.0
        %1193 = vmatpush1.msra.mxu0 %v821
        %1194 = vmatprep.subr.mxu0 0.0
        %1195 = vmatpush1.msra.mxu0 %v826
        %1196 = vmatprep.subr.mxu0 0.0
        %1197 = vmatpush1.msra.mxu0 %v831
        %1198 = vmatprep.subr.mxu0 0.0
        %1199 = vmatpush1.msra.mxu0 %v836
        %1200 = vmatprep.subr.mxu0 0.0
        %1201 = vmatpush1.msra.mxu0 0.0
        %1202 = vmatprep.subr.mxu0 0.0
        %1203 = vmatpush1.msra.mxu0 0.0
        %1204 = vmatprep.subr.mxu0 0.0
        %1205 = vmatpush1.msra.mxu0 0.0
        %1206 = vmatprep.subr.mxu0 0.0
        %1207 = vmatpush1.msra.mxu0 0.0
        %1208 = vmatprep.subr.mxu0 0.0
        %1209 = vmatpush1.msra.mxu0 0.0
        %1210 = vmatprep.subr.mxu0 0.0
        %1211 = vmatpush1.msra.mxu0 0.0
        %1212 = vmatprep.subr.mxu0 0.0
        %1213 = vmatpush1.msra.mxu0 0.0
        %1214 = vmatprep.subr.mxu0 0.0
        %1215 = vmatpush1.msra.mxu0 0.0
        %1216 = vmatprep.subr.mxu0 0.0
        %1217 = vmatpush1.msra.mxu0 0.0
        %1218 = vmatprep.subr.mxu0 0.0
        %1219 = vmatpush1.msra.mxu0 0.0
        %1220 = vmatprep.subr.mxu0 0.0
        %1221 = vmatpush1.msra.mxu0 0.0
        %1222 = vmatprep.subr.mxu0 0.0
        %1223 = vmatpush1.msra.mxu0 0.0
        %1224 = vmatprep.subr.mxu0 0.0
        %1225 = vmatpush1.msra.mxu0 0.0
        %1226 = vmatprep.subr.mxu0 0.0
        %1227 = vmatpush1.msra.mxu0 0.0
        %1228 = vmatprep.subr.mxu0 0.0
        %1229 = vmatpush1.msra.mxu0 0.0
        %1230 = vmatprep.subr.mxu0 0.0
        %1231 = vmatpush1.msra.mxu0 0.0
        %1232 = vmatprep.mubr.f32.mxu0 0.0
        %1233 = vmatmul.mubr.f32.gmra.mrb[0].mxu0 %v841
        %v1234 = vpop.f32.mrb[0].mxu0
        %v1235 = vadd.f32 %v1005, %v1234
        %v1236 = vpop.f32.mrb[0].mxu0
        %1237 = vmatprep.mubr.f32.mxu0 0.0
        %1238 = vmatmul.mubr.f32.gmra.mrb[0].mxu0 %v844
        %v1239 = vpop.f32.mrb[0].mxu0
        %v1240 = vadd.f32 %v1010, %v1239
        %v1241 = vpop.f32.mrb[0].mxu0
        %1242 = vmatprep.mubr.f32.mxu0 0.0
        %1243 = vmatmul.mubr.f32.gmra.mrb[0].mxu0 %v847
        %v1244 = vpop.f32.mrb[0].mxu0
        %v1245 = vadd.f32 %v1015, %v1244
        %v1246 = vpop.f32.mrb[0].mxu0
        %1247 = vmatprep.mubr.f32.mxu0 0.0
        %1248 = vmatmul.mubr.f32.gmra.mrb[0].mxu0 %v850
        %v1249 = vpop.f32.mrb[0].mxu0
        %v1250 = vadd.f32 %v1020, %v1249
        %v1251 = vpop.f32.mrb[0].mxu0
        %1252 = vmatprep.mubr.f32.mxu0 0.0
        %1253 = vmatmul.mubr.f32.gmra.mrb[0].mxu0 %v853
        %v1254 = vpop.f32.mrb[0].mxu0
        %v1255 = vadd.f32 %v1025, %v1254
        %v1256 = vpop.f32.mrb[0].mxu0
        %1257 = vmatprep.mubr.f32.mxu0 0.0
        %1258 = vmatmul.mubr.f32.gmra.mrb[0].mxu0 %v856
        %v1259 = vpop.f32.mrb[0].mxu0
        %v1260 = vadd.f32 %v1030, %v1259
        %v1261 = vpop.f32.mrb[0].mxu0
        %1262 = vmatprep.mubr.f32.mxu0 0.0
        %1263 = vmatmul.mubr.f32.gmra.mrb[0].mxu0 %v859
        %v1264 = vpop.f32.mrb[0].mxu0
        %v1265 = vadd.f32 %v1035, %v1264
        %v1266 = vpop.f32.mrb[0].mxu0
        %1267 = vmatprep.mubr.f32.mxu0 0.0
        %1268 = vmatmul.mubr.f32.gmra.mrb[0].mxu0 %v862
        %v1269 = vpop.f32.mrb[0].mxu0
        %v1270 = vadd.f32 %v1040, %v1269
        %v1271 = vpop.f32.mrb[0].mxu0
        %1272 = vmatprep.mubr.f32.mxu0 0.0
        %1273 = vmatmul.mubr.f32.gmra.mrb[0].mxu0 %v865
        %v1274 = vpop.f32.mrb[0].mxu0
        %v1275 = vadd.f32 %v1045, %v1274
        %v1276 = vpop.f32.mrb[0].mxu0
        %1277 = vmatprep.mubr.f32.mxu0 0.0
        %1278 = vmatmul.mubr.f32.gmra.mrb[0].mxu0 %v868
        %v1279 = vpop.f32.mrb[0].mxu0
        %v1280 = vadd.f32 %v1050, %v1279
        %v1281 = vpop.f32.mrb[0].mxu0
        %1282 = vmatprep.mubr.f32.mxu0 0.0
        %1283 = vmatmul.mubr.f32.gmra.mrb[0].mxu0 %v871
        %v1284 = vpop.f32.mrb[0].mxu0
        %v1285 = vadd.f32 %v1055, %v1284
        %v1286 = vpop.f32.mrb[0].mxu0
        %1287 = vmatprep.mubr.f32.mxu0 0.0
        %1288 = vmatmul.mubr.f32.gmra.mrb[0].mxu0 %v874
        %v1289 = vpop.f32.mrb[0].mxu0
        %v1290 = vadd.f32 %v1060, %v1289
        %v1291 = vpop.f32.mrb[0].mxu0
        %1292 = vmatprep.mubr.f32.mxu0 0.0
        %1293 = vmatmul.mubr.f32.gmra.mrb[0].mxu0 %v877
        %v1294 = vpop.f32.mrb[0].mxu0
        %v1295 = vadd.f32 %v1065, %v1294
        %v1296 = vpop.f32.mrb[0].mxu0
        %1297 = vmatprep.mubr.f32.mxu0 0.0
        %1298 = vmatmul.mubr.f32.gmra.mrb[0].mxu0 %v880
        %v1299 = vpop.f32.mrb[0].mxu0
        %v1300 = vadd.f32 %v1070, %v1299
        %v1301 = vpop.f32.mrb[0].mxu0
        %1302 = vmatprep.mubr.f32.mxu0 0.0
        %1303 = vmatmul.mubr.f32.gmra.mrb[0].mxu0 %v883
        %v1304 = vpop.f32.mrb[0].mxu0
        %v1305 = vadd.f32 %v1075, %v1304
        %v1306 = vpop.f32.mrb[0].mxu0
        %1307 = vmatprep.mubr.f32.mxu0 0.0
        %1308 = vmatmul.mubr.f32.gmra.mrb[0].mxu0 %v886
        %v1309 = vpop.f32.mrb[0].mxu0
        %v1310 = vadd.f32 %v1080, %v1309
        %v1311 = vpop.f32.mrb[0].mxu0
        %1312 = vmatprep.mubr.f32.mxu0 0.0
        %1313 = vmatmul.mubr.f32.gmra.mrb[0].mxu0 %v889
        %v1314 = vpop.f32.mrb[0].mxu0
        %v1315 = vadd.f32 %v1085, %v1314
        %v1316 = vpop.f32.mrb[0].mxu0
        %1317 = vmatprep.mubr.f32.mxu0 0.0
        %1318 = vmatmul.mubr.f32.gmra.mrb[0].mxu0 %v892
        %v1319 = vpop.f32.mrb[0].mxu0
        %v1320 = vadd.f32 %v1090, %v1319
        %v1321 = vpop.f32.mrb[0].mxu0
        %1322 = vmatprep.mubr.f32.mxu0 0.0
        %1323 = vmatmul.mubr.f32.gmra.mrb[0].mxu0 %v895
        %v1324 = vpop.f32.mrb[0].mxu0
        %v1325 = vadd.f32 %v1095, %v1324
        %v1326 = vpop.f32.mrb[0].mxu0
        %1327 = vmatprep.mubr.f32.mxu0 0.0
        %1328 = vmatmul.mubr.f32.gmra.mrb[0].mxu0 %v898
        %v1329 = vpop.f32.mrb[0].mxu0
        %v1330 = vadd.f32 %v1100, %v1329
        %v1331 = vpop.f32.mrb[0].mxu0
        %1332 = vmatprep.mubr.f32.mxu0 0.0
        %1333 = vmatmul.mubr.f32.gmra.mrb[0].mxu0 %v901
        %v1334 = vpop.f32.mrb[0].mxu0
        %v1335 = vadd.f32 %v1105, %v1334
        %v1336 = vpop.f32.mrb[0].mxu0
        %1337 = vmatprep.mubr.f32.mxu0 0.0
        %1338 = vmatmul.mubr.f32.gmra.mrb[0].mxu0 %v904
        %v1339 = vpop.f32.mrb[0].mxu0
        %v1340 = vadd.f32 %v1110, %v1339
        %v1341 = vpop.f32.mrb[0].mxu0
        %1342 = vmatprep.mubr.f32.mxu0 0.0
        %1343 = vmatmul.mubr.f32.gmra.mrb[0].mxu0 %v907
        %v1344 = vpop.f32.mrb[0].mxu0
        %v1345 = vadd.f32 %v1115, %v1344
        %v1346 = vpop.f32.mrb[0].mxu0
        %1347 = vmatprep.mubr.f32.mxu0 0.0
        %1348 = vmatmul.mubr.f32.gmra.mrb[0].mxu0 %v910
        %v1349 = vpop.f32.mrb[0].mxu0
        %v1350 = vadd.f32 %v1120, %v1349
        %v1351 = vpop.f32.mrb[0].mxu0
        %1352 = vmatprep.mubr.f32.mxu0 0.0
        %1353 = vmatmul.mubr.f32.gmra.mrb[0].mxu0 %v913
        %v1354 = vpop.f32.mrb[0].mxu0
        %v1355 = vadd.f32 %v1125, %v1354
        %v1356 = vpop.f32.mrb[0].mxu0
        %1357 = vmatprep.mubr.f32.mxu0 0.0
        %1358 = vmatmul.mubr.f32.gmra.mrb[0].mxu0 %v916
        %v1359 = vpop.f32.mrb[0].mxu0
        %v1360 = vadd.f32 %v1130, %v1359
        %v1361 = vpop.f32.mrb[0].mxu0
        %1362 = vmatprep.mubr.f32.mxu0 0.0
        %1363 = vmatmul.mubr.f32.gmra.mrb[0].mxu0 %v919
        %v1364 = vpop.f32.mrb[0].mxu0
        %v1365 = vadd.f32 %v1135, %v1364
        %v1366 = vpop.f32.mrb[0].mxu0
        %1367 = vmatprep.mubr.f32.mxu0 0.0
        %1368 = vmatmul.mubr.f32.gmra.mrb[0].mxu0 %v922
        %v1369 = vpop.f32.mrb[0].mxu0
        %v1370 = vadd.f32 %v1140, %v1369
        %v1371 = vpop.f32.mrb[0].mxu0
        %1372 = vmatprep.mubr.f32.mxu0 0.0
        %1373 = vmatmul.mubr.f32.gmra.mrb[0].mxu0 %v925
        %v1374 = vpop.f32.mrb[0].mxu0
        %v1375 = vadd.f32 %v1145, %v1374
        %v1376 = vpop.f32.mrb[0].mxu0
        %1377 = vmatprep.mubr.f32.mxu0 0.0
        %1378 = vmatmul.mubr.f32.gmra.mrb[0].mxu0 %v928
        %v1379 = vpop.f32.mrb[0].mxu0
        %v1380 = vadd.f32 %v1150, %v1379
        %v1381 = vpop.f32.mrb[0].mxu0
        %1382 = vmatprep.mubr.f32.mxu0 0.0
        %1383 = vmatmul.mubr.f32.gmra.mrb[0].mxu0 %v931
        %v1384 = vpop.f32.mrb[0].mxu0
        %v1385 = vadd.f32 %v1155, %v1384
        %v1386 = vpop.f32.mrb[0].mxu0
        %1387 = vmatprep.mubr.f32.mxu0 0.0
        %1388 = vmatmul.mubr.f32.gmra.mrb[0].mxu0 %v934
        %v1389 = vpop.f32.mrb[0].mxu0
        %v1390 = vadd.f32 %v1160, %v1389
        %v1391 = vpop.f32.mrb[0].mxu0
        %1392 = vmatprep.mubr.f32.mxu0 0.0
        %1393 = vmatmul.mubr.f32.gmra.mrb[0].mxu0 %v937
        %v1394 = vpop.f32.mrb[0].mxu0
        %v1395 = vadd.f32 %v1165, %v1394
        %v1396 = vpop.f32.mrb[0].mxu0
        %1397 = vdwg.mxu0
        %v1398 = vmul.f32 %v1235, %v1235
        %v1399 = vmul.f32 %v1240, %v1240
        %v1400 = vmul.f32 %v1245, %v1245
        %v1401 = vmul.f32 %v1250, %v1250
        %v1402 = vmul.f32 %v1255, %v1255
        %v1403 = vmul.f32 %v1260, %v1260
        %v1404 = vmul.f32 %v1265, %v1265
        %v1405 = vmul.f32 %v1270, %v1270
        %v1406 = vmul.f32 %v1275, %v1275
        %v1407 = vmul.f32 %v1280, %v1280
        %v1408 = vmul.f32 %v1285, %v1285
        %v1409 = vmul.f32 %v1290, %v1290
        %v1410 = vmul.f32 %v1295, %v1295
        %v1411 = vmul.f32 %v1300, %v1300
        %v1412 = vmul.f32 %v1305, %v1305
        %v1413 = vmul.f32 %v1310, %v1310
        %v1414 = vmul.f32 %v1315, %v1315
        %vm1424 = vcmask 1045504
        %v1425 = vrot.slane %v1275, 2
        %v1426 = vrot.slane %v1280, 2
        %v1427 = vsel %vm1424, %v1425, %v1426
        %v1428 = vrot.slane %v1285, 2
        %v1429 = vsel %vm1424, %v1426, %v1428
        %v1430 = vrot.slane %v1290, 2
        %v1431 = vsel %vm1424, %v1428, %v1430
        %v1432 = vrot.slane %v1295, 2
        %v1433 = vsel %vm1424, %v1430, %v1432
        %v1434 = vrot.slane %v1300, 2
        %v1435 = vsel %vm1424, %v1432, %v1434
        %v1436 = vrot.slane %v1305, 2
        %v1437 = vsel %vm1424, %v1434, %v1436
        %v1438 = vrot.slane %v1310, 2
        %v1439 = vsel %vm1424, %v1436, %v1438
        %v1440 = vrot.slane %v1315, 2
        %v1441 = vsel %vm1424, %v1438, %v1440
        %v1451 = vmul.f32 %v1235, %v1427
        %v1452 = vmul.f32 %v1240, %v1429
        %v1453 = vmul.f32 %v1245, %v1431
        %v1454 = vmul.f32 %v1250, %v1433
        %v1455 = vmul.f32 %v1255, %v1435
        %v1456 = vmul.f32 %v1260, %v1437
        %v1457 = vmul.f32 %v1265, %v1439
        %v1458 = vmul.f32 %v1270, %v1441
        %v1459 = vmul.f32 %v1275, %v1440
        %vm1469 = vcmask 1043456
        %v1470 = vrot.slane %v1398, 4
        %v1471 = vrot.slane %v1399, 4
        %v1472 = vsel %vm1469, %v1470, %v1471
        %v1473 = vrot.slane %v1400, 4
        %v1474 = vsel %vm1469, %v1471, %v1473
        %v1475 = vrot.slane %v1401, 4
        %v1476 = vsel %vm1469, %v1473, %v1475
        %v1477 = vrot.slane %v1402, 4
        %v1478 = vsel %vm1469, %v1475, %v1477
        %v1479 = vrot.slane %v1403, 4
        %v1480 = vsel %vm1469, %v1477, %v1479
        %v1481 = vrot.slane %v1404, 4
        %v1482 = vsel %vm1469, %v1479, %v1481
        %v1483 = vrot.slane %v1405, 4
        %v1484 = vsel %vm1469, %v1481, %v1483
        %v1485 = vrot.slane %v1406, 4
        %v1486 = vsel %vm1469, %v1483, %v1485
        %v1496 = vsub.f32 %v1315, %v1470
        %v1497 = vsub.f32 %v1320, %v1472
        %v1498 = vsub.f32 %v1325, %v1474
        %v1499 = vsub.f32 %v1330, %v1476
        %v1500 = vsub.f32 %v1335, %v1478
        %v1501 = vsub.f32 %v1340, %v1480
        %v1502 = vsub.f32 %v1345, %v1482
        %v1503 = vsub.f32 %v1350, %v1484
        %v1504 = vsub.f32 %v1355, %v1486
        %vm1513 = vcmask 1041408
        %v1514 = vrot.slane %v1406, 6
        %v1515 = vrot.slane %v1407, 6
        %v1516 = vsel %vm1513, %v1514, %v1515
        %v1517 = vrot.slane %v1408, 6
        %v1518 = vsel %vm1513, %v1515, %v1517
        %v1519 = vrot.slane %v1409, 6
        %v1520 = vsel %vm1513, %v1517, %v1519
        %v1521 = vrot.slane %v1410, 6
        %v1522 = vsel %vm1513, %v1519, %v1521
        %v1523 = vrot.slane %v1411, 6
        %v1524 = vsel %vm1513, %v1521, %v1523
        %v1525 = vrot.slane %v1412, 6
        %v1526 = vsel %vm1513, %v1523, %v1525
        %v1527 = vrot.slane %v1413, 6
        %v1528 = vsel %vm1513, %v1525, %v1527
        %v1529 = vrot.slane %v1414, 6
        %v1530 = vsel %vm1513, %v1527, %v1529
        %v1540 = vsub.f32 %v1496, %v1514
        %v1541 = vsub.f32 %v1497, %v1516
        %v1542 = vsub.f32 %v1498, %v1518
        %v1543 = vsub.f32 %v1499, %v1520
        %v1544 = vsub.f32 %v1500, %v1522
        %v1545 = vsub.f32 %v1501, %v1524
        %v1546 = vsub.f32 %v1502, %v1526
        %v1547 = vsub.f32 %v1503, %v1528
        %v1548 = vsub.f32 %v1504, %v1530
        %v1558 = vrot.slane %v1451, 2
        %v1559 = vrot.slane %v1452, 2
        %v1560 = vsel %vm1424, %v1558, %v1559
        %v1561 = vrot.slane %v1453, 2
        %v1562 = vsel %vm1424, %v1559, %v1561
        %v1563 = vrot.slane %v1454, 2
        %v1564 = vsel %vm1424, %v1561, %v1563
        %v1565 = vrot.slane %v1455, 2
        %v1566 = vsel %vm1424, %v1563, %v1565
        %v1567 = vrot.slane %v1456, 2
        %v1568 = vsel %vm1424, %v1565, %v1567
        %v1569 = vrot.slane %v1457, 2
        %v1570 = vsel %vm1424, %v1567, %v1569
        %v1571 = vrot.slane %v1458, 2
        %v1572 = vsel %vm1424, %v1569, %v1571
        %v1573 = vrot.slane %v1459, 2
        %v1574 = vsel %vm1424, %v1571, %v1573
        %v1584 = vsub.f32 %v1355, %v1558
        %v1585 = vsub.f32 %v1360, %v1560
        %v1586 = vsub.f32 %v1365, %v1562
        %v1587 = vsub.f32 %v1370, %v1564
        %v1588 = vsub.f32 %v1375, %v1566
        %v1589 = vsub.f32 %v1380, %v1568
        %v1590 = vsub.f32 %v1385, %v1570
        %v1591 = vsub.f32 %v1390, %v1572
        %v1592 = vsub.f32 %v1395, %v1574
        %v1593 = vmul.f32 %v1451, 2.0
        %v1594 = vmul.f32 %v1452, 2.0
        %v1595 = vmul.f32 %v1453, 2.0
        %v1596 = vmul.f32 %v1454, 2.0
        %v1597 = vmul.f32 %v1455, 2.0
        %v1598 = vmul.f32 %v1456, 2.0
        %v1599 = vmul.f32 %v1457, 2.0
        %v1600 = vmul.f32 %v1458, 2.0
        %v1601 = vmul.f32 %v1459, 2.0
        %v1602 = vadd.f32 %v1593, 0.0001
        %v1603 = vadd.f32 %v1594, 0.0001
        %v1604 = vadd.f32 %v1595, 0.0001
        %v1605 = vadd.f32 %v1596, 0.0001
        %v1606 = vadd.f32 %v1597, 0.0001
        %v1607 = vadd.f32 %v1598, 0.0001
        %v1608 = vadd.f32 %v1599, 0.0001
        %v1609 = vadd.f32 %v1600, 0.0001
        %v1610 = vadd.f32 %v1601, 0.0001
        %v1611 = vmul.f32 %v1584, 2.0
        %v1612 = vmul.f32 %v1585, 2.0
        %v1613 = vmul.f32 %v1586, 2.0
        %v1614 = vmul.f32 %v1587, 2.0
        %v1615 = vmul.f32 %v1588, 2.0
        %v1616 = vmul.f32 %v1589, 2.0
        %v1617 = vmul.f32 %v1590, 2.0
        %v1618 = vmul.f32 %v1591, 2.0
        %v1619 = vmul.f32 %v1592, 2.0
        %v1620 = vadd.f32 %v1611, 0.0009
        %v1621 = vadd.f32 %v1612, 0.0009
        %v1622 = vadd.f32 %v1613, 0.0009
        %v1623 = vadd.f32 %v1614, 0.0009
        %v1624 = vadd.f32 %v1615, 0.0009
        %v1625 = vadd.f32 %v1616, 0.0009
        %v1626 = vadd.f32 %v1617, 0.0009
        %v1627 = vadd.f32 %v1618, 0.0009
        %v1628 = vadd.f32 %v1619, 0.0009
        %v1638 = vrot.slane %v1620, 6
        %v1639 = vrot.slane %v1621, 6
        %v1640 = vsel %vm1513, %v1638, %v1639
        %v1641 = vrot.slane %v1622, 6
        %v1642 = vsel %vm1513, %v1639, %v1641
        %v1643 = vrot.slane %v1623, 6
        %v1644 = vsel %vm1513, %v1641, %v1643
        %v1645 = vrot.slane %v1624, 6
        %v1646 = vsel %vm1513, %v1643, %v1645
        %v1647 = vrot.slane %v1625, 6
        %v1648 = vsel %vm1513, %v1645, %v1647
        %v1649 = vrot.slane %v1626, 6
        %v1650 = vsel %vm1513, %v1647, %v1649
        %v1651 = vrot.slane %v1627, 6
        %v1652 = vsel %vm1513, %v1649, %v1651
        %v1653 = vrot.slane %v1628, 6
        %v1654 = vsel %vm1513, %v1651, %v1653
        %v1664 = vmul.f32 %v1602, %v1640
        %v1665 = vmul.f32 %v1603, %v1642
        %v1666 = vmul.f32 %v1604, %v1644
        %v1667 = vmul.f32 %v1605, %v1646
        %v1668 = vmul.f32 %v1606, %v1648
        %v1669 = vmul.f32 %v1607, %v1650
        %v1670 = vmul.f32 %v1608, %v1652
        %v1671 = vmul.f32 %v1609, %v1654
        %v1672 = vmul.f32 %v1610, %v1653
        %v1673 = vrot.slane %v1406, 2
        %v1674 = vrot.slane %v1407, 2
        %v1675 = vsel %vm1424, %v1673, %v1674
        %v1676 = vrot.slane %v1408, 2
        %v1677 = vsel %vm1424, %v1674, %v1676
        %v1678 = vrot.slane %v1409, 2
        %v1679 = vsel %vm1424, %v1676, %v1678
        %v1680 = vrot.slane %v1410, 2
        %v1681 = vsel %vm1424, %v1678, %v1680
        %v1682 = vrot.slane %v1411, 2
        %v1683 = vsel %vm1424, %v1680, %v1682
        %v1684 = vrot.slane %v1412, 2
        %v1685 = vsel %vm1424, %v1682, %v1684
        %v1686 = vrot.slane %v1413, 2
        %v1687 = vsel %vm1424, %v1684, %v1686
        %v1688 = vrot.slane %v1414, 2
        %v1689 = vsel %vm1424, %v1686, %v1688
        %v1699 = vadd.f32 %v1398, %v1675
        %v1700 = vadd.f32 %v1399, %v1677
        %v1701 = vadd.f32 %v1400, %v1679
        %v1702 = vadd.f32 %v1401, %v1681
        %v1703 = vadd.f32 %v1402, %v1683
        %v1704 = vadd.f32 %v1403, %v1685
        %v1705 = vadd.f32 %v1404, %v1687
        %v1706 = vadd.f32 %v1405, %v1689
        %v1707 = vadd.f32 %v1406, %v1688
        %v1708 = vadd.f32 %v1699, 0.0001
        %v1709 = vadd.f32 %v1700, 0.0001
        %v1710 = vadd.f32 %v1701, 0.0001
        %v1711 = vadd.f32 %v1702, 0.0001
        %v1712 = vadd.f32 %v1703, 0.0001
        %v1713 = vadd.f32 %v1704, 0.0001
        %v1714 = vadd.f32 %v1705, 0.0001
        %v1715 = vadd.f32 %v1706, 0.0001
        %v1716 = vadd.f32 %v1707, 0.0001
        %v1717 = vadd.f32 %v1540, 0.0009
        %v1718 = vadd.f32 %v1541, 0.0009
        %v1719 = vadd.f32 %v1542, 0.0009
        %v1720 = vadd.f32 %v1543, 0.0009
        %v1721 = vadd.f32 %v1544, 0.0009
        %v1722 = vadd.f32 %v1545, 0.0009
        %v1723 = vadd.f32 %v1546, 0.0009
        %v1724 = vadd.f32 %v1547, 0.0009
        %v1725 = vadd.f32 %v1548, 0.0009
        %v1735 = vrot.slane %v1717, 4
        %v1736 = vrot.slane %v1718, 4
        %v1737 = vsel %vm1469, %v1735, %v1736
        %v1738 = vrot.slane %v1719, 4
        %v1739 = vsel %vm1469, %v1736, %v1738
        %v1740 = vrot.slane %v1720, 4
        %v1741 = vsel %vm1469, %v1738, %v1740
        %v1742 = vrot.slane %v1721, 4
        %v1743 = vsel %vm1469, %v1740, %v1742
        %v1744 = vrot.slane %v1722, 4
        %v1745 = vsel %vm1469, %v1742, %v1744
        %v1746 = vrot.slane %v1723, 4
        %v1747 = vsel %vm1469, %v1744, %v1746
        %v1748 = vrot.slane %v1724, 4
        %v1749 = vsel %vm1469, %v1746, %v1748
        %v1750 = vrot.slane %v1725, 4
        %v1751 = vsel %vm1469, %v1748, %v1750
        %v1761 = vmul.f32 %v1708, %v1737
        %v1762 = vmul.f32 %v1709, %v1739
        %v1763 = vmul.f32 %v1710, %v1741
        %v1764 = vmul.f32 %v1711, %v1743
        %v1765 = vmul.f32 %v1712, %v1745
        %v1766 = vmul.f32 %v1713, %v1747
        %v1767 = vmul.f32 %v1714, %v1749
        %v1768 = vmul.f32 %v1715, %v1751
        %v1769 = vmul.f32 %v1716, %v1750
        %v1770 = vrcp.pop %v1761
        %v1771 = vrcp.pop %v1762
        %v1772 = vrcp.pop %v1763
        %v1773 = vrcp.pop %v1764
        %v1774 = vrcp.pop %v1765
        %v1775 = vrcp.pop %v1766
        %v1776 = vrcp.pop %v1767
        %v1777 = vrcp.pop %v1768
        %v1778 = vrcp.pop %v1769
        %v1779 = vmul.f32 %v1664, %v1770
        %v1780 = vmul.f32 %v1665, %v1771
        %v1781 = vmul.f32 %v1666, %v1772
        %v1782 = vmul.f32 %v1667, %v1773
        %v1783 = vmul.f32 %v1668, %v1774
        %v1784 = vmul.f32 %v1669, %v1775
        %v1785 = vmul.f32 %v1670, %v1776
        %v1786 = vmul.f32 %v1671, %v1777
        %v1787 = vmul.f32 %v1672, %v1778
        %vm1788 = vcmask 179200
        %v1789 = vsel %vm1788, %v1779, 0.0
        %1790 = vadd.xlane.f32.xlu0 %v1789
        %v1791 = vpop.xlane.xlu0 %1790
        %v1792 = vsel %vm1788, %v1780, 0.0
        %1793 = vadd.xlane.f32.xlu0 %v1792
        %v1794 = vpop.xlane.xlu0 %1793
        %v1795 = vsel %vm1788, %v1781, 0.0
        %1796 = vadd.xlane.f32.xlu0 %v1795
        %v1797 = vpop.xlane.xlu0 %1796
        %v1798 = vsel %vm1788, %v1782, 0.0
        %1799 = vadd.xlane.f32.xlu0 %v1798
        %v1800 = vpop.xlane.xlu0 %1799
        %v1801 = vsel %vm1788, %v1783, 0.0
        %1802 = vadd.xlane.f32.xlu0 %v1801
        %v1803 = vpop.xlane.xlu0 %1802
        %v1804 = vsel %vm1788, %v1784, 0.0
        %1805 = vadd.xlane.f32.xlu0 %v1804
        %v1806 = vpop.xlane.xlu0 %1805
        %v1807 = vsel %vm1788, %v1785, 0.0
        %1808 = vadd.xlane.f32.xlu0 %v1807
        %v1809 = vpop.xlane.xlu0 %1808
        %v1810 = vsel %vm1788, %v1786, 0.0
        %1811 = vadd.xlane.f32.xlu0 %v1810
        %v1812 = vpop.xlane.xlu0 %1811
        %vm1813 = vcmask 173056
        %v1814 = vsel %vm1813, %v1787, 0.0
        %1815 = vadd.xlane.f32.xlu0 %v1814
        %v1816 = vpop.xlane.xlu0 %1815
        %v1817 = vadd.f32 %v1791, %v1794
        %v1818 = vadd.f32 %v1817, %v1797
        %v1819 = vadd.f32 %v1818, %v1800
        %v1820 = vadd.f32 %v1819, %v1803
        %v1821 = vadd.f32 %v1820, %v1806
        %v1822 = vadd.f32 %v1821, %v1809
        %v1823 = vadd.f32 %v1822, %v1812
        %v1824 = vsel %vm1513, %v1816, 0.0
        %v1825 = vadd.f32 %v1823, %v1824
        %v1826 = vrot.slane %v1825, 4
        %v1827 = vadd.f32 %v1825, %v1826
        %v1828 = vrot.slane %v1827, 2
        %v1829 = vadd.f32 %v1827, %v1828
        %v1830 = vrot.slane %v1829, 1
        %v1831 = vadd.f32 %v1829, %v1830
        %vm1832 = vcmask 0
        %1833 = vst.msk [vmem:[%s312] sm:$0x1] %vm1832, %v1831
        %p1834 = scmp.lt.s32.totalorder %s26, 1
        %s1835 = scalar_select %p1834, %s26, 1
        %p1836 = scmp.lt.s32.totalorder %s27, 0
        %s1837 = scalar_select %p1836, %s27, 0
        %s1838 = sadd.s32 %s1837, %s1835
        %s1839 = scalar_lea.vmem %s4, %s1838
        // Predicated region
        $region53: #{a_call__.1} parent=35 // pred_check
          %p1840 = pneg %p152
        $region54: #{a_call__.1} parent=35 // pred_check_branch
          %1842 = sbr.rel (%p1840) target = $region56
        $region55: #{a_call__.1} parent=35 // pred_region
          _
        $region56: #{a_call__.1} parent=35 // pred_fallthru
          _
      $region36: #{a_call__.1} parent=5 // pred_fallthru
        _
      %p1843 = scmp.le.s32.totalorder 2, %s17
      // Predicated region
      $region57: #{a_call__.1} parent=5 // pred_check
        %p1844 = pneg %p1843
      $region58: #{a_call__.1} parent=5 // pred_check_branch
        %1846 = sbr.rel (%p1844) target = $region60
      $region59: #{a_call__.1} parent=5 // pred_region
        %s1847 = ssub.s32 %s17, 2
        // Predicated region
        $region61: #{a_call__.1} parent=59 // pred_check
          %p1848 = pneg %p158
        $region62: #{a_call__.1} parent=59 // pred_check_branch
          %1850 = sbr.rel (%p1848) target = $region64
        $region63: #{a_call__.1} parent=59 // pred_region
          %p1851 = scmp.lt.s32.totalorder %s28, 1
          %s1852 = scalar_select %p1851, %s28, 1
          %p1853 = scmp.lt.s32.totalorder %s29, 0
          %s1854 = scalar_select %p1853, %s29, 0
          %s1855 = sadd.s32 %s1854, %s1852
          %s1856 = scalar_lea.vmem %s4, %s1855
        $region64: #{a_call__.1} parent=59 // pred_fallthru
          _
      $region60: #{a_call__.1} parent=5 // pred_fallthru
        _
    $region6: #{a_call__.1} parent=1 // loop_footer
      %s21 = sadd.s32 1, %s17
    $region7: #{a_call__.1} parent=1 // loop_footer_branch
      %16 = sbr.rel target = $region3
    $region8: #{a_call__.1} parent=1 // loop_exit
      _
    %1857 = vsyncpa [#allocation3], 1
    %s1858 = scalar_lea.sflag [#allocation3], 1
    %1859 = vsyncpa %s1858, 1
    %1860 = vsyncpa [#allocation5], 1
    %s1861 = scalar_lea.sflag [#allocation5], 1
    %1862 = vsyncpa %s1861, 1
    %1863 = vsyncpa [#allocation8], 1

</llo_original>
